<compile_context>
chip_gen: v7x
topology: tpu7x:2x2x1
jax: 0.10.0
libtpu: 0.0.40
codegen_flags: <defaults>
</compile_context>

<pallas_src>
import functools

import jax
import jax.numpy as jnp
from jax.experimental import pallas as pl
from jax.experimental.pallas import tpu as pltpu


def _layer_norm(x, gamma, beta, eps=1e-5):
    """nn.LayerNorm semantics: biased variance, eps inside the sqrt, affine."""
    mu = jnp.mean(x, axis=-1, keepdims=True)
    xc = x - mu
    var = jnp.mean(xc * xc, axis=-1, keepdims=True)
    return xc * jax.lax.rsqrt(var + eps) * gamma + beta


def block_kernel(x_ref, wqkv_ref, wo_ref, bo_ref,
                 g1_ref, b1_ref, g2_ref, b2_ref,
                 w1_ref, fb1_ref, w2_ref, fb2_ref,
                 o_ref,
                 *, n_heads, head_size, approx_recip):
    """One grid step = one batch element.  x_ref/o_ref: (T, C)."""
    T, C = x_ref.shape
    nh, H = n_heads, head_size
    dd = wqkv_ref.dtype  # matmul-operand dtype (f32 or bf16); accumulation is f32

    x = x_ref[...].astype(jnp.float32)                       # (T, C)

    # ---------------- LayerNorm 1 (f32) ----------------
    h1 = _layer_norm(x, g1_ref[...], b1_ref[...])

    # -------- fused QKV projection: one wide MXU matmul; single downstream cast --------
    qkv = jnp.dot(h1.astype(dd), wqkv_ref[...],
                  preferred_element_type=jnp.float32)        # (T, 3C), f32 acc
    qkv = qkv.astype(dd)                                     # cast once for q/k/v/p use

    # Causal mask built once, (T, T) only (broadcast over heads).
    row = jax.lax.broadcasted_iota(jnp.int32, (T, T), 0)
    col = jax.lax.broadcasted_iota(jnp.int32, (T, T), 1)
    causal = row >= col

    # ------------- attention: static loop over heads, 2-D MXU matmuls -------------
    # Head merge is folded into the output projection (no ctx scratch / concat):
    #   concat_h(ctx_h) @ wo  ==  sum_h ctx_h @ wo[h*H:(h+1)*H, :]
    sa = jnp.zeros((T, C), jnp.float32)
    for h in range(nh):
        q = qkv[:, h * H:(h + 1) * H]                        # scale pre-folded into W_q
        k = qkv[:, C + h * H:C + (h + 1) * H]
        v = qkv[:, 2 * C + h * H:2 * C + (h + 1) * H]
        # Contract last dims directly -> no k.T relayout through the XLU.
        s = jnp.einsum('qd,kd->qk', q, k,
                       preferred_element_type=jnp.float32)   # (T, T)
        s = jnp.where(causal, s, -1e30)                      # finite fill: NaN-safe
        m = jnp.max(s, axis=-1, keepdims=True)
        p = jnp.exp(s - m)
        denom = jnp.sum(p, axis=-1, keepdims=True)
        p = p * pl.reciprocal(denom, approx=approx_recip)    # EUP reciprocal slot
        # TODO(synk): attention-weight dropout omitted (eval-mode identity).
        ctx = jnp.dot(p.astype(dd), v,
                      preferred_element_type=jnp.float32)    # (T, H)
        sa = sa + jnp.dot(ctx.astype(dd), wo_ref[h * H:(h + 1) * H, :],
                          preferred_element_type=jnp.float32)

    sa = sa + bo_ref[...]
    # TODO(synk): post-projection dropout omitted (eval-mode identity).
    x1 = x + sa

    # ---------------- LayerNorm 2 + FeedForward + residual ----------------
    h2 = _layer_norm(x1, g2_ref[...], b2_ref[...])
    hidden = jnp.dot(h2.astype(dd), w1_ref[...],
                     preferred_element_type=jnp.float32) + fb1_ref[...]
    hidden = jnp.maximum(hidden, 0.0)                        # ReLU
    ffn = jnp.dot(hidden.astype(dd), w2_ref[...],
                  preferred_element_type=jnp.float32) + fb2_ref[...]
    # TODO(synk): feed-forward dropout omitted (eval-mode identity).

    o_ref[...] = (x1 + ffn).astype(o_ref.dtype)


def transformer_block(x, params, *, n_heads, compute_dtype=None, approx_recip=True):
    """x: (B, T, C).  params: per-head wq/wk/wv (nh, C, H), wo (C, C), bo (1, C),
    LN params g1/b1/g2/b2 (1, C), FFN w1 (C, 4C), fb1 (1, 4C), w2 (4C, C), fb2 (1, C)."""
    B, T, C = x.shape
    H = C // n_heads
    assert n_heads * H == C

    # Fuse per-head Q/K/V weights into a single (C, 3C) slab (wrapper-side),
    # column order [Q heads | K heads | V heads].  The attention scale
    # (n_embd**-0.5, matching the PyTorch module) is folded into the Q columns.
    def slab(w):  # (nh, C, H) -> (C, nh*H) with head h at columns [h*H, (h+1)*H)
        return jnp.transpose(w, (1, 0, 2)).reshape(C, n_heads * H)

    scale = float(C) ** -0.5
    wqkv = jnp.concatenate(
        [slab(params['wq']) * scale, slab(params['wk']), slab(params['wv'])], axis=1)

    wo, w1, w2 = params['wo'], params['w1'], params['w2']
    wdtype = jnp.float32
    if compute_dtype is not None:
        # bf16 (or other) matmul operands — MXU-native on v5e/v6e/v7x; biases and
        # LN params stay f32 so the elementwise path never touches low precision.
        wdtype = compute_dtype
        wqkv = wqkv.astype(compute_dtype)
        wo = wo.astype(compute_dtype)
        w1 = w1.astype(compute_dtype)
        w2 = w2.astype(compute_dtype)

    kernel = functools.partial(block_kernel, n_heads=n_heads, head_size=H,
                               approx_recip=approx_recip)

    def resident(shape):
        # Constant block index across the grid -> DMA'd once, stays VMEM-resident.
        return pl.BlockSpec(shape, lambda b, _s=shape: (0,) * len(_s))

    # Explicit VMEM budget, sized for the tightest chip (v7x: 64 MiB physical,
    # 32 MiB default scoped).  Weights resident once + f32 activation working set
    # per step, with double-buffered x/o tiles and 2x headroom.
    wbytes = jnp.dtype(wdtype).itemsize
    weight_bytes = (3 * C * C + C * C + 4 * C * C + 4 * C * C) * wbytes + 8 * C * 4
    act_bytes = 4 * (2 * 2 * T * C        # x / o tiles, double-buffered
                     + T * 3 * C          # qkv
                     + T * 4 * C          # FFN hidden
                     + 4 * T * T)         # per-head scores / probs
    vmem_limit = int(min(40 * 2 ** 20,
                         max(16 * 2 ** 20, 2 * (weight_bytes + act_bytes))))

    out = pl.pallas_call(
        kernel,
        out_shape=jax.ShapeDtypeStruct((B, T, C), x.dtype),
        grid_spec=pltpu.PrefetchScalarGridSpec(
            num_scalar_prefetch=0,
            grid=(B,),                                           # one batch element / step
            in_specs=[
                pl.BlockSpec((None, T, C), lambda b: (b, 0, 0)),  # x: batch-tiled stream
                resident((C, 3 * C)),       # fused QKV weight slab
                resident((C, C)),           # output projection weight
                resident((1, C)),           # output projection bias
                resident((1, C)), resident((1, C)),   # ln1 gamma / beta
                resident((1, C)), resident((1, C)),   # ln2 gamma / beta
                resident((C, 4 * C)),       # FFN w1
                resident((1, 4 * C)),       # FFN b1
                resident((4 * C, C)),       # FFN w2
                resident((1, C)),           # FFN b2
            ],
            out_specs=pl.BlockSpec((None, T, C), lambda b: (b, 0, 0)),
        ),
        compiler_params=pltpu.CompilerParams(
            dimension_semantics=("parallel",),    # megacore sharding on v7x
            vmem_limit_bytes=vmem_limit,
        ),
    )(x, wqkv, wo, params['bo'], params['g1'], params['b1'],
      params['g2'], params['b2'], w1, params['fb1'], w2, params['fb2'])

    return out


def reference_block(x, p, n_heads):
    """Pure-JAX reference mirroring the PyTorch Block (eval mode)."""
    B, T, C = x.shape

    def ln(z, g, b):
        mu = z.mean(-1, keepdims=True)
        var = ((z - mu) ** 2).mean(-1, keepdims=True)
        return (z - mu) * jax.lax.rsqrt(var + 1e-5) * g + b

    h = ln(x, p['g1'], p['b1'])
    scale = C ** (-0.5)
    tril = jnp.tril(jnp.ones((T, T), dtype=bool))
    outs = []
    for hh in range(n_heads):
        q = h @ p['wq'][hh]
        k = h @ p['wk'][hh]
        v = h @ p['wv'][hh]
        wei = (q @ jnp.swapaxes(k, -2, -1)) * scale
        wei = jnp.where(tril[None], wei, -jnp.inf)
        wei = jax.nn.softmax(wei, axis=-1)
        outs.append(wei @ v)
    sa = jnp.concatenate(outs, axis=-1) @ p['wo'] + p['bo']
    x1 = x + sa
    h2 = ln(x1, p['g2'], p['b2'])
    ffn = jnp.maximum(h2 @ p['w1'] + p['fb1'], 0.0) @ p['w2'] + p['fb2']
    return x1 + ffn


if __name__ == "__main__":
    B = 2            # batch
    T = 8            # block_size / sequence length
    n_embd = 32      # C
    n_heads = 4
    head_size = n_embd // n_heads
    dtype = jnp.float32

    key = jax.random.PRNGKey(0)
    ks = jax.random.split(key, 12)
    bound = 1.0 / (n_embd ** 0.5)
    bound2 = 1.0 / ((4 * n_embd) ** 0.5)

    def u(k, shape, b):
        return jax.random.uniform(k, shape, dtype, -b, b)

    x = jax.random.normal(ks[0], (B, T, n_embd), dtype)
    params = dict(
        wq=u(ks[1], (n_heads, n_embd, head_size), bound),
        wk=u(ks[2], (n_heads, n_embd, head_size), bound),
        wv=u(ks[3], (n_heads, n_embd, head_size), bound),
        wo=u(ks[4], (n_embd, n_embd), bound),
        bo=u(ks[5], (1, n_embd), bound),
        g1=1.0 + 0.1 * jax.random.normal(ks[6], (1, n_embd), dtype),
        b1=0.1 * jax.random.normal(ks[7], (1, n_embd), dtype),
        g2=1.0 + 0.1 * jax.random.normal(ks[8], (1, n_embd), dtype),
        b2=0.1 * jax.random.normal(ks[9], (1, n_embd), dtype),
        w1=u(ks[10], (n_embd, 4 * n_embd), bound),
        fb1=u(ks[11], (1, 4 * n_embd), bound),
        w2=u(ks[4], (4 * n_embd, n_embd), bound2),
        fb2=u(ks[5], (1, n_embd), bound2),
    )

    ref = reference_block(x, params, n_heads)

    # f32 path (tolerance allows for the EUP approximate-reciprocal softmax).
    out = transformer_block(x, params, n_heads=n_heads)
    out = jax.block_until_ready(out)
    assert out.shape == (B, T, n_embd)
    assert jnp.allclose(out, ref, atol=2e-2, rtol=2e-2), "f32 kernel mismatch vs reference"

    # bf16 matmul-operand path (MXU-native on v5e/v6e/v7x); coarse bound reflects
    # bf16 weight rounding.
    out_bf16 = transformer_block(x, params, n_heads=n_heads, compute_dtype=jnp.bfloat16)
    out_bf16 = jax.block_until_ready(out_bf16)
    assert jnp.allclose(out_bf16, ref, atol=2e-1, rtol=2e-1), "bf16 kernel diverged"

    print("KERNEL_OK")
</pallas_src>

<mosaic_0001>
module attributes {stable_mosaic.version = 11 : i64} {
  func.func @block_kernel(%arg0: i32, %arg1: memref<1x8x32xf32, #tpu.memory_space<vmem>>, %arg2: memref<32x96xf32, #tpu.memory_space<vmem>>, %arg3: memref<32x32xf32, #tpu.memory_space<vmem>>, %arg4: memref<1x32xf32, #tpu.memory_space<vmem>>, %arg5: memref<1x32xf32, #tpu.memory_space<vmem>>, %arg6: memref<1x32xf32, #tpu.memory_space<vmem>>, %arg7: memref<1x32xf32, #tpu.memory_space<vmem>>, %arg8: memref<1x32xf32, #tpu.memory_space<vmem>>, %arg9: memref<32x128xf32, #tpu.memory_space<vmem>>, %arg10: memref<1x128xf32, #tpu.memory_space<vmem>>, %arg11: memref<128x32xf32, #tpu.memory_space<vmem>>, %arg12: memref<1x32xf32, #tpu.memory_space<vmem>>, %arg13: memref<1x8x32xf32, #tpu.memory_space<vmem>>) attributes {dimension_semantics = [#tpu.dimension_semantics<parallel>], iteration_bounds = array<i64: 2>, scalar_prefetch = 0 : i64, scratch_operands = 0 : i64, tpu.core_type = #tpu.core_type<tc>, window_params = [{transform_indices = @transform_0, window_bounds = array<i64: 1, 8, 32>}, {pipeline_mode = #tpu.pipeline_mode<synchronous>, transform_indices = @transform_1, window_bounds = array<i64: 32, 96>}, {pipeline_mode = #tpu.pipeline_mode<synchronous>, transform_indices = @transform_2, window_bounds = array<i64: 32, 32>}, {pipeline_mode = #tpu.pipeline_mode<synchronous>, transform_indices = @transform_3, window_bounds = array<i64: 1, 32>}, {pipeline_mode = #tpu.pipeline_mode<synchronous>, transform_indices = @transform_4, window_bounds = array<i64: 1, 32>}, {pipeline_mode = #tpu.pipeline_mode<synchronous>, transform_indices = @transform_5, window_bounds = array<i64: 1, 32>}, {pipeline_mode = #tpu.pipeline_mode<synchronous>, transform_indices = @transform_6, window_bounds = array<i64: 1, 32>}, {pipeline_mode = #tpu.pipeline_mode<synchronous>, transform_indices = @transform_7, window_bounds = array<i64: 1, 32>}, {pipeline_mode = #tpu.pipeline_mode<synchronous>, transform_indices = @transform_8, window_bounds = array<i64: 32, 128>}, {pipeline_mode = #tpu.pipeline_mode<synchronous>, transform_indices = @transform_9, window_bounds = array<i64: 1, 128>}, {pipeline_mode = #tpu.pipeline_mode<synchronous>, transform_indices = @transform_10, window_bounds = array<i64: 128, 32>}, {pipeline_mode = #tpu.pipeline_mode<synchronous>, transform_indices = @transform_11, window_bounds = array<i64: 1, 32>}, {transform_indices = @transform_12, window_bounds = array<i64: 1, 8, 32>}]} {
    %c0 = arith.constant 0 : index
    %c0_0 = arith.constant 0 : index
    %c0_1 = arith.constant 0 : index
    %0 = vector.load %arg1[%c0, %c0_0, %c0_1] : memref<1x8x32xf32, #tpu.memory_space<vmem>>, vector<1x8x32xf32>
    %1 = vector.shape_cast %0 : vector<1x8x32xf32> to vector<8x32xf32>
    %c0_2 = arith.constant 0 : index
    %c0_3 = arith.constant 0 : index
    %2 = vector.load %arg5[%c0_2, %c0_3] : memref<1x32xf32, #tpu.memory_space<vmem>>, vector<1x32xf32>
    %c0_4 = arith.constant 0 : index
    %c0_5 = arith.constant 0 : index
    %3 = vector.load %arg6[%c0_4, %c0_5] : memref<1x32xf32, #tpu.memory_space<vmem>>, vector<1x32xf32>
    %cst = arith.constant dense<0.000000e+00> : vector<8xf32>
    %4 = vector.multi_reduction <add>, %1, %cst [1] : vector<8x32xf32> to vector<8xf32>
    %5 = vector.shape_cast %4 : vector<8xf32> to vector<8x1xf32>
    %cst_6 = arith.constant 3.200000e+01 : f32
    %6 = vector.broadcast %cst_6 : f32 to vector<8x1xf32>
    %7 = arith.divf %5, %6 : vector<8x1xf32>
    %8 = vector.broadcast %7 : vector<8x1xf32> to vector<8x32xf32>
    %9 = arith.subf %1, %8 : vector<8x32xf32>
    %10 = arith.mulf %9, %9 : vector<8x32xf32>
    %cst_7 = arith.constant dense<0.000000e+00> : vector<8xf32>
    %11 = vector.multi_reduction <add>, %10, %cst_7 [1] : vector<8x32xf32> to vector<8xf32>
    %12 = vector.shape_cast %11 : vector<8xf32> to vector<8x1xf32>
    %cst_8 = arith.constant 3.200000e+01 : f32
    %13 = vector.broadcast %cst_8 : f32 to vector<8x1xf32>
    %14 = arith.divf %12, %13 : vector<8x1xf32>
    %cst_9 = arith.constant 9.99999974E-6 : f32
    %15 = vector.broadcast %cst_9 : f32 to vector<8x1xf32>
    %16 = arith.addf %14, %15 : vector<8x1xf32>
    %17 = math.rsqrt %16 : vector<8x1xf32>
    %18 = vector.broadcast %17 : vector<8x1xf32> to vector<8x32xf32>
    %19 = arith.mulf %9, %18 : vector<8x32xf32>
    %20 = vector.broadcast %2 : vector<1x32xf32> to vector<8x32xf32>
    %21 = arith.mulf %19, %20 : vector<8x32xf32>
    %22 = vector.broadcast %3 : vector<1x32xf32> to vector<8x32xf32>
    %23 = arith.addf %21, %22 : vector<8x32xf32>
    %c0_10 = arith.constant 0 : index
    %c0_11 = arith.constant 0 : index
    %24 = vector.load %arg2[%c0_10, %c0_11] : memref<32x96xf32, #tpu.memory_space<vmem>>, vector<32x96xf32>
    %cst_12 = arith.constant dense<0.000000e+00> : vector<8x96xf32>
    %25 = tpu.matmul %23, %24, %cst_12 {dimension_numbers = #tpu.dot_dimension_numbers<[1], [0], [0], [1], [0, 0, 1, 1], [], []>} : vector<8x32xf32>, vector<32x96xf32>, vector<8x96xf32> -> vector<8x96xf32>
    %26 = tpu.iota {dimensions = array<i32: 0>} : vector<8x8xi32>
    %27 = tpu.iota {dimensions = array<i32: 1>} : vector<8x8xi32>
    %28 = arith.cmpi sge, %26, %27 : vector<8x8xi32>
    %cst_13 = arith.constant 0.000000e+00 : f32
    %29 = vector.broadcast %cst_13 : f32 to vector<8x32xf32>
    %30 = vector.extract_strided_slice %25 {offsets = [0, 0], sizes = [8, 8], strides = [1, 1]} : vector<8x96xf32> to vector<8x8xf32>
    %31 = vector.extract_strided_slice %25 {offsets = [0, 32], sizes = [8, 8], strides = [1, 1]} : vector<8x96xf32> to vector<8x8xf32>
    %32 = vector.extract_strided_slice %25 {offsets = [0, 64], sizes = [8, 8], strides = [1, 1]} : vector<8x96xf32> to vector<8x8xf32>
    "tpu.trace_start"() <{level = 10 : i32, message = "qd,kd->qk"}> : () -> ()
    %cst_14 = arith.constant dense<0.000000e+00> : vector<8x8xf32>
    %33 = tpu.matmul %30, %31, %cst_14 {dimension_numbers = #tpu.dot_dimension_numbers<[1], [1], [0], [0], [0, 0, 1, 0], [], []>} : vector<8x8xf32>, vector<8x8xf32>, vector<8x8xf32> -> vector<8x8xf32>
    %cst_15 = arith.constant -1.000000e+30 : f32
    "tpu.trace_stop"() : () -> ()
    %34 = vector.broadcast %cst_15 : f32 to vector<8x8xf32>
    %35 = arith.select %28, %33, %34 : vector<8x8xi1>, vector<8x8xf32>
    %cst_16 = arith.constant dense<0xFF800000> : vector<8xf32>
    %36 = vector.multi_reduction <maximumf>, %35, %cst_16 [1] : vector<8x8xf32> to vector<8xf32>
    %37 = vector.shape_cast %36 : vector<8xf32> to vector<8x1xf32>
    %38 = vector.broadcast %37 : vector<8x1xf32> to vector<8x8xf32>
    %39 = arith.subf %35, %38 : vector<8x8xf32>
    %40 = math.exp %39 : vector<8x8xf32>
    %cst_17 = arith.constant dense<0.000000e+00> : vector<8xf32>
    %41 = vector.multi_reduction <add>, %40, %cst_17 [1] : vector<8x8xf32> to vector<8xf32>
    %42 = vector.shape_cast %41 : vector<8xf32> to vector<8x1xf32>
    %43 = tpu.reciprocal %42 {approx = true} : vector<8x1xf32> -> vector<8x1xf32>
    %44 = vector.broadcast %43 : vector<8x1xf32> to vector<8x8xf32>
    %45 = arith.mulf %40, %44 : vector<8x8xf32>
    %cst_18 = arith.constant dense<0.000000e+00> : vector<8x8xf32>
    %46 = tpu.matmul %45, %32, %cst_18 {dimension_numbers = #tpu.dot_dimension_numbers<[1], [0], [0], [1], [0, 0, 1, 1], [], []>} : vector<8x8xf32>, vector<8x8xf32>, vector<8x8xf32> -> vector<8x8xf32>
    %c0_19 = arith.constant 0 : index
    %c0_20 = arith.constant 0 : index
    %47 = vector.load %arg3[%c0_19, %c0_20] : memref<32x32xf32, #tpu.memory_space<vmem>>, vector<8x32xf32>
    %cst_21 = arith.constant dense<0.000000e+00> : vector<8x32xf32>
    %48 = tpu.matmul %46, %47, %cst_21 {dimension_numbers = #tpu.dot_dimension_numbers<[1], [0], [0], [1], [0, 0, 1, 1], [], []>} : vector<8x8xf32>, vector<8x32xf32>, vector<8x32xf32> -> vector<8x32xf32>
    %49 = arith.addf %29, %48 : vector<8x32xf32>
    %50 = vector.extract_strided_slice %25 {offsets = [0, 8], sizes = [8, 8], strides = [1, 1]} : vector<8x96xf32> to vector<8x8xf32>
    %51 = vector.extract_strided_slice %25 {offsets = [0, 40], sizes = [8, 8], strides = [1, 1]} : vector<8x96xf32> to vector<8x8xf32>
    %52 = vector.extract_strided_slice %25 {offsets = [0, 72], sizes = [8, 8], strides = [1, 1]} : vector<8x96xf32> to vector<8x8xf32>
    "tpu.trace_start"() <{level = 10 : i32, message = "qd,kd->qk"}> : () -> ()
    %cst_22 = arith.constant dense<0.000000e+00> : vector<8x8xf32>
    %53 = tpu.matmul %50, %51, %cst_22 {dimension_numbers = #tpu.dot_dimension_numbers<[1], [1], [0], [0], [0, 0, 1, 0], [], []>} : vector<8x8xf32>, vector<8x8xf32>, vector<8x8xf32> -> vector<8x8xf32>
    %cst_23 = arith.constant -1.000000e+30 : f32
    "tpu.trace_stop"() : () -> ()
    %54 = vector.broadcast %cst_23 : f32 to vector<8x8xf32>
    %55 = arith.select %28, %53, %54 : vector<8x8xi1>, vector<8x8xf32>
    %cst_24 = arith.constant dense<0xFF800000> : vector<8xf32>
    %56 = vector.multi_reduction <maximumf>, %55, %cst_24 [1] : vector<8x8xf32> to vector<8xf32>
    %57 = vector.shape_cast %56 : vector<8xf32> to vector<8x1xf32>
    %58 = vector.broadcast %57 : vector<8x1xf32> to vector<8x8xf32>
    %59 = arith.subf %55, %58 : vector<8x8xf32>
    %60 = math.exp %59 : vector<8x8xf32>
    %cst_25 = arith.constant dense<0.000000e+00> : vector<8xf32>
    %61 = vector.multi_reduction <add>, %60, %cst_25 [1] : vector<8x8xf32> to vector<8xf32>
    %62 = vector.shape_cast %61 : vector<8xf32> to vector<8x1xf32>
    %63 = tpu.reciprocal %62 {approx = true} : vector<8x1xf32> -> vector<8x1xf32>
    %64 = vector.broadcast %63 : vector<8x1xf32> to vector<8x8xf32>
    %65 = arith.mulf %60, %64 : vector<8x8xf32>
    %cst_26 = arith.constant dense<0.000000e+00> : vector<8x8xf32>
    %66 = tpu.matmul %65, %52, %cst_26 {dimension_numbers = #tpu.dot_dimension_numbers<[1], [0], [0], [1], [0, 0, 1, 1], [], []>} : vector<8x8xf32>, vector<8x8xf32>, vector<8x8xf32> -> vector<8x8xf32>
    %c8 = arith.constant 8 : index
    %c0_27 = arith.constant 0 : index
    %67 = vector.load %arg3[%c8, %c0_27] : memref<32x32xf32, #tpu.memory_space<vmem>>, vector<8x32xf32>
    %cst_28 = arith.constant dense<0.000000e+00> : vector<8x32xf32>
    %68 = tpu.matmul %66, %67, %cst_28 {dimension_numbers = #tpu.dot_dimension_numbers<[1], [0], [0], [1], [0, 0, 1, 1], [], []>} : vector<8x8xf32>, vector<8x32xf32>, vector<8x32xf32> -> vector<8x32xf32>
    %69 = arith.addf %49, %68 : vector<8x32xf32>
    %70 = vector.extract_strided_slice %25 {offsets = [0, 16], sizes = [8, 8], strides = [1, 1]} : vector<8x96xf32> to vector<8x8xf32>
    %71 = vector.extract_strided_slice %25 {offsets = [0, 48], sizes = [8, 8], strides = [1, 1]} : vector<8x96xf32> to vector<8x8xf32>
    %72 = vector.extract_strided_slice %25 {offsets = [0, 80], sizes = [8, 8], strides = [1, 1]} : vector<8x96xf32> to vector<8x8xf32>
    "tpu.trace_start"() <{level = 10 : i32, message = "qd,kd->qk"}> : () -> ()
    %cst_29 = arith.constant dense<0.000000e+00> : vector<8x8xf32>
    %73 = tpu.matmul %70, %71, %cst_29 {dimension_numbers = #tpu.dot_dimension_numbers<[1], [1], [0], [0], [0, 0, 1, 0], [], []>} : vector<8x8xf32>, vector<8x8xf32>, vector<8x8xf32> -> vector<8x8xf32>
    %cst_30 = arith.constant -1.000000e+30 : f32
    "tpu.trace_stop"() : () -> ()
    %74 = vector.broadcast %cst_30 : f32 to vector<8x8xf32>
    %75 = arith.select %28, %73, %74 : vector<8x8xi1>, vector<8x8xf32>
    %cst_31 = arith.constant dense<0xFF800000> : vector<8xf32>
    %76 = vector.multi_reduction <maximumf>, %75, %cst_31 [1] : vector<8x8xf32> to vector<8xf32>
    %77 = vector.shape_cast %76 : vector<8xf32> to vector<8x1xf32>
    %78 = vector.broadcast %77 : vector<8x1xf32> to vector<8x8xf32>
    %79 = arith.subf %75, %78 : vector<8x8xf32>
    %80 = math.exp %79 : vector<8x8xf32>
    %cst_32 = arith.constant dense<0.000000e+00> : vector<8xf32>
    %81 = vector.multi_reduction <add>, %80, %cst_32 [1] : vector<8x8xf32> to vector<8xf32>
    %82 = vector.shape_cast %81 : vector<8xf32> to vector<8x1xf32>
    %83 = tpu.reciprocal %82 {approx = true} : vector<8x1xf32> -> vector<8x1xf32>
    %84 = vector.broadcast %83 : vector<8x1xf32> to vector<8x8xf32>
    %85 = arith.mulf %80, %84 : vector<8x8xf32>
    %cst_33 = arith.constant dense<0.000000e+00> : vector<8x8xf32>
    %86 = tpu.matmul %85, %72, %cst_33 {dimension_numbers = #tpu.dot_dimension_numbers<[1], [0], [0], [1], [0, 0, 1, 1], [], []>} : vector<8x8xf32>, vector<8x8xf32>, vector<8x8xf32> -> vector<8x8xf32>
    %c16 = arith.constant 16 : index
    %c0_34 = arith.constant 0 : index
    %87 = vector.load %arg3[%c16, %c0_34] : memref<32x32xf32, #tpu.memory_space<vmem>>, vector<8x32xf32>
    %cst_35 = arith.constant dense<0.000000e+00> : vector<8x32xf32>
    %88 = tpu.matmul %86, %87, %cst_35 {dimension_numbers = #tpu.dot_dimension_numbers<[1], [0], [0], [1], [0, 0, 1, 1], [], []>} : vector<8x8xf32>, vector<8x32xf32>, vector<8x32xf32> -> vector<8x32xf32>
    %89 = arith.addf %69, %88 : vector<8x32xf32>
    %90 = vector.extract_strided_slice %25 {offsets = [0, 24], sizes = [8, 8], strides = [1, 1]} : vector<8x96xf32> to vector<8x8xf32>
    %91 = vector.extract_strided_slice %25 {offsets = [0, 56], sizes = [8, 8], strides = [1, 1]} : vector<8x96xf32> to vector<8x8xf32>
    %92 = vector.extract_strided_slice %25 {offsets = [0, 88], sizes = [8, 8], strides = [1, 1]} : vector<8x96xf32> to vector<8x8xf32>
    "tpu.trace_start"() <{level = 10 : i32, message = "qd,kd->qk"}> : () -> ()
    %cst_36 = arith.constant dense<0.000000e+00> : vector<8x8xf32>
    %93 = tpu.matmul %90, %91, %cst_36 {dimension_numbers = #tpu.dot_dimension_numbers<[1], [1], [0], [0], [0, 0, 1, 0], [], []>} : vector<8x8xf32>, vector<8x8xf32>, vector<8x8xf32> -> vector<8x8xf32>
    %cst_37 = arith.constant -1.000000e+30 : f32
    "tpu.trace_stop"() : () -> ()
    %94 = vector.broadcast %cst_37 : f32 to vector<8x8xf32>
    %95 = arith.select %28, %93, %94 : vector<8x8xi1>, vector<8x8xf32>
    %cst_38 = arith.constant dense<0xFF800000> : vector<8xf32>
    %96 = vector.multi_reduction <maximumf>, %95, %cst_38 [1] : vector<8x8xf32> to vector<8xf32>
    %97 = vector.shape_cast %96 : vector<8xf32> to vector<8x1xf32>
    %98 = vector.broadcast %97 : vector<8x1xf32> to vector<8x8xf32>
    %99 = arith.subf %95, %98 : vector<8x8xf32>
    %100 = math.exp %99 : vector<8x8xf32>
    %cst_39 = arith.constant dense<0.000000e+00> : vector<8xf32>
    %101 = vector.multi_reduction <add>, %100, %cst_39 [1] : vector<8x8xf32> to vector<8xf32>
    %102 = vector.shape_cast %101 : vector<8xf32> to vector<8x1xf32>
    %103 = tpu.reciprocal %102 {approx = true} : vector<8x1xf32> -> vector<8x1xf32>
    %104 = vector.broadcast %103 : vector<8x1xf32> to vector<8x8xf32>
    %105 = arith.mulf %100, %104 : vector<8x8xf32>
    %cst_40 = arith.constant dense<0.000000e+00> : vector<8x8xf32>
    %106 = tpu.matmul %105, %92, %cst_40 {dimension_numbers = #tpu.dot_dimension_numbers<[1], [0], [0], [1], [0, 0, 1, 1], [], []>} : vector<8x8xf32>, vector<8x8xf32>, vector<8x8xf32> -> vector<8x8xf32>
    %c24 = arith.constant 24 : index
    %c0_41 = arith.constant 0 : index
    %107 = vector.load %arg3[%c24, %c0_41] : memref<32x32xf32, #tpu.memory_space<vmem>>, vector<8x32xf32>
    %cst_42 = arith.constant dense<0.000000e+00> : vector<8x32xf32>
    %108 = tpu.matmul %106, %107, %cst_42 {dimension_numbers = #tpu.dot_dimension_numbers<[1], [0], [0], [1], [0, 0, 1, 1], [], []>} : vector<8x8xf32>, vector<8x32xf32>, vector<8x32xf32> -> vector<8x32xf32>
    %109 = arith.addf %89, %108 : vector<8x32xf32>
    %c0_43 = arith.constant 0 : index
    %c0_44 = arith.constant 0 : index
    %110 = vector.load %arg4[%c0_43, %c0_44] : memref<1x32xf32, #tpu.memory_space<vmem>>, vector<1x32xf32>
    %111 = vector.broadcast %110 : vector<1x32xf32> to vector<8x32xf32>
    %112 = arith.addf %109, %111 : vector<8x32xf32>
    %113 = arith.addf %1, %112 : vector<8x32xf32>
    %c0_45 = arith.constant 0 : index
    %c0_46 = arith.constant 0 : index
    %114 = vector.load %arg7[%c0_45, %c0_46] : memref<1x32xf32, #tpu.memory_space<vmem>>, vector<1x32xf32>
    %c0_47 = arith.constant 0 : index
    %c0_48 = arith.constant 0 : index
    %115 = vector.load %arg8[%c0_47, %c0_48] : memref<1x32xf32, #tpu.memory_space<vmem>>, vector<1x32xf32>
    %cst_49 = arith.constant dense<0.000000e+00> : vector<8xf32>
    %116 = vector.multi_reduction <add>, %113, %cst_49 [1] : vector<8x32xf32> to vector<8xf32>
    %117 = vector.shape_cast %116 : vector<8xf32> to vector<8x1xf32>
    %cst_50 = arith.constant 3.200000e+01 : f32
    %118 = vector.broadcast %cst_50 : f32 to vector<8x1xf32>
    %119 = arith.divf %117, %118 : vector<8x1xf32>
    %120 = vector.broadcast %119 : vector<8x1xf32> to vector<8x32xf32>
    %121 = arith.subf %113, %120 : vector<8x32xf32>
    %122 = arith.mulf %121, %121 : vector<8x32xf32>
    %cst_51 = arith.constant dense<0.000000e+00> : vector<8xf32>
    %123 = vector.multi_reduction <add>, %122, %cst_51 [1] : vector<8x32xf32> to vector<8xf32>
    %124 = vector.shape_cast %123 : vector<8xf32> to vector<8x1xf32>
    %cst_52 = arith.constant 3.200000e+01 : f32
    %125 = vector.broadcast %cst_52 : f32 to vector<8x1xf32>
    %126 = arith.divf %124, %125 : vector<8x1xf32>
    %cst_53 = arith.constant 9.99999974E-6 : f32
    %127 = vector.broadcast %cst_53 : f32 to vector<8x1xf32>
    %128 = arith.addf %126, %127 : vector<8x1xf32>
    %129 = math.rsqrt %128 : vector<8x1xf32>
    %130 = vector.broadcast %129 : vector<8x1xf32> to vector<8x32xf32>
    %131 = arith.mulf %121, %130 : vector<8x32xf32>
    %132 = vector.broadcast %114 : vector<1x32xf32> to vector<8x32xf32>
    %133 = arith.mulf %131, %132 : vector<8x32xf32>
    %134 = vector.broadcast %115 : vector<1x32xf32> to vector<8x32xf32>
    %135 = arith.addf %133, %134 : vector<8x32xf32>
    %c0_54 = arith.constant 0 : index
    %c0_55 = arith.constant 0 : index
    %136 = vector.load %arg9[%c0_54, %c0_55] : memref<32x128xf32, #tpu.memory_space<vmem>>, vector<32x128xf32>
    %cst_56 = arith.constant dense<0.000000e+00> : vector<8x128xf32>
    %137 = tpu.matmul %135, %136, %cst_56 {dimension_numbers = #tpu.dot_dimension_numbers<[1], [0], [0], [1], [0, 0, 1, 1], [], []>} : vector<8x32xf32>, vector<32x128xf32>, vector<8x128xf32> -> vector<8x128xf32>
    %c0_57 = arith.constant 0 : index
    %c0_58 = arith.constant 0 : index
    %138 = vector.load %arg10[%c0_57, %c0_58] : memref<1x128xf32, #tpu.memory_space<vmem>>, vector<1x128xf32>
    %139 = vector.broadcast %138 : vector<1x128xf32> to vector<8x128xf32>
    %140 = arith.addf %137, %139 : vector<8x128xf32>
    %cst_59 = arith.constant 0.000000e+00 : f32
    %141 = vector.broadcast %cst_59 : f32 to vector<8x128xf32>
    %142 = arith.maximumf %140, %141 : vector<8x128xf32>
    %c0_60 = arith.constant 0 : index
    %c0_61 = arith.constant 0 : index
    %143 = vector.load %arg11[%c0_60, %c0_61] : memref<128x32xf32, #tpu.memory_space<vmem>>, vector<128x32xf32>
    %cst_62 = arith.constant dense<0.000000e+00> : vector<8x32xf32>
    %144 = tpu.matmul %142, %143, %cst_62 {dimension_numbers = #tpu.dot_dimension_numbers<[1], [0], [0], [1], [0, 0, 1, 1], [], []>} : vector<8x128xf32>, vector<128x32xf32>, vector<8x32xf32> -> vector<8x32xf32>
    %c0_63 = arith.constant 0 : index
    %c0_64 = arith.constant 0 : index
    %145 = vector.load %arg12[%c0_63, %c0_64] : memref<1x32xf32, #tpu.memory_space<vmem>>, vector<1x32xf32>
    %146 = vector.broadcast %145 : vector<1x32xf32> to vector<8x32xf32>
    %147 = arith.addf %144, %146 : vector<8x32xf32>
    %148 = arith.addf %113, %147 : vector<8x32xf32>
    %c0_65 = arith.constant 0 : index
    %c0_66 = arith.constant 0 : index
    %c0_67 = arith.constant 0 : index
    %149 = vector.load %arg13[%c0_65, %c0_66, %c0_67] : memref<1x8x32xf32, #tpu.memory_space<vmem>>, vector<1x8x32xf32>
    %150 = vector.shape_cast %149 : vector<1x8x32xf32> to vector<8x32xf32>
    %151 = vector.shape_cast %148 : vector<8x32xf32> to vector<1x8x32xf32>
    tpu.vector_store %arg13[%c0_65, %c0_66, %c0_67], %151 {strides = array<i32>} : memref<1x8x32xf32, #tpu.memory_space<vmem>>, vector<1x8x32xf32>,
    return
  }
  func.func @transform_0(%arg0: i32) -> (i32, i32, i32) {
    %c0_i32 = arith.constant 0 : i32
    %c0_i32_0 = arith.constant 0 : i32
    %c0_i32_1 = arith.constant 0 : i32
    return %arg0, %c0_i32, %c0_i32_0 : i32, i32, i32
  }
  func.func @transform_1(%arg0: i32) -> (i32, i32) {
    %c0_i32 = arith.constant 0 : i32
    %c0_i32_0 = arith.constant 0 : i32
    %c0_i32_1 = arith.constant 0 : i32
    return %c0_i32, %c0_i32_0 : i32, i32
  }
  func.func @transform_2(%arg0: i32) -> (i32, i32) {
    %c0_i32 = arith.constant 0 : i32
    %c0_i32_0 = arith.constant 0 : i32
    %c0_i32_1 = arith.constant 0 : i32
    return %c0_i32, %c0_i32_0 : i32, i32
  }
  func.func @transform_3(%arg0: i32) -> (i32, i32) {
    %c0_i32 = arith.constant 0 : i32
    %c0_i32_0 = arith.constant 0 : i32
    %c0_i32_1 = arith.constant 0 : i32
    return %c0_i32, %c0_i32_0 : i32, i32
  }
  func.func @transform_4(%arg0: i32) -> (i32, i32) {
    %c0_i32 = arith.constant 0 : i32
    %c0_i32_0 = arith.constant 0 : i32
    %c0_i32_1 = arith.constant 0 : i32
    return %c0_i32, %c0_i32_0 : i32, i32
  }
  func.func @transform_5(%arg0: i32) -> (i32, i32) {
    %c0_i32 = arith.constant 0 : i32
    %c0_i32_0 = arith.constant 0 : i32
    %c0_i32_1 = arith.constant 0 : i32
    return %c0_i32, %c0_i32_0 : i32, i32
  }
  func.func @transform_6(%arg0: i32) -> (i32, i32) {
    %c0_i32 = arith.constant 0 : i32
    %c0_i32_0 = arith.constant 0 : i32
    %c0_i32_1 = arith.constant 0 : i32
    return %c0_i32, %c0_i32_0 : i32, i32
  }
  func.func @transform_7(%arg0: i32) -> (i32, i32) {
    %c0_i32 = arith.constant 0 : i32
    %c0_i32_0 = arith.constant 0 : i32
    %c0_i32_1 = arith.constant 0 : i32
    return %c0_i32, %c0_i32_0 : i32, i32
  }
  func.func @transform_8(%arg0: i32) -> (i32, i32) {
    %c0_i32 = arith.constant 0 : i32
    %c0_i32_0 = arith.constant 0 : i32
    %c0_i32_1 = arith.constant 0 : i32
    return %c0_i32, %c0_i32_0 : i32, i32
  }
  func.func @transform_9(%arg0: i32) -> (i32, i32) {
    %c0_i32 = arith.constant 0 : i32
    %c0_i32_0 = arith.constant 0 : i32
    %c0_i32_1 = arith.constant 0 : i32
    return %c0_i32, %c0_i32_0 : i32, i32
  }
  func.func @transform_10(%arg0: i32) -> (i32, i32) {
    %c0_i32 = arith.constant 0 : i32
    %c0_i32_0 = arith.constant 0 : i32
    %c0_i32_1 = arith.constant 0 : i32
    return %c0_i32, %c0_i32_0 : i32, i32
  }
  func.func @transform_11(%arg0: i32) -> (i32, i32) {
    %c0_i32 = arith.constant 0 : i32
    %c0_i32_0 = arith.constant 0 : i32
    %c0_i32_1 = arith.constant 0 : i32
    return %c0_i32, %c0_i32_0 : i32, i32
  }
  func.func @transform_12(%arg0: i32) -> (i32, i32, i32) {
    %c0_i32 = arith.constant 0 : i32
    %c0_i32_0 = arith.constant 0 : i32
    %c0_i32_1 = arith.constant 0 : i32
    return %arg0, %c0_i32, %c0_i32_0 : i32, i32, i32
  }
}

</mosaic_0001>

<llo_original>
// kernel: tpu_custom_call.1
$region0: #{tpu_custom_call.1}
  #allocation0 [shape = 'u32[]', space=smem, size = 0x4, offset = 0x4, fixed_abs, tag = 'smem constant byte address 0x4 - core index']
  #allocation1 [shape = 'u32[144,128]{1,0:T(1,128)}', space=vmem, size = 0x12000, scoped, tag = 'internal scratch']
  %s0 = inlined_call_operand.vmem [shape: f32[2,8,32], index: 0, kind: input, shape index: {}]
  %s1 = inlined_call_operand.vmem [shape: f32[32,96], index: 1, kind: input, shape index: {}]
  %s2 = inlined_call_operand.vmem [shape: f32[32,32], index: 2, kind: input, shape index: {}]
  %s3 = inlined_call_operand.vmem [shape: f32[1,32], index: 3, kind: input, shape index: {}]
  %s4 = inlined_call_operand.vmem [shape: f32[1,32], index: 4, kind: input, shape index: {}]
  %s5 = inlined_call_operand.vmem [shape: f32[1,32], index: 5, kind: input, shape index: {}]
  %s6 = inlined_call_operand.vmem [shape: f32[1,32], index: 6, kind: input, shape index: {}]
  %s7 = inlined_call_operand.vmem [shape: f32[1,32], index: 7, kind: input, shape index: {}]
  %s8 = inlined_call_operand.vmem [shape: f32[32,128], index: 8, kind: input, shape index: {}]
  %s9 = inlined_call_operand.vmem [shape: f32[1,128], index: 9, kind: input, shape index: {}]
  %s10 = inlined_call_operand.vmem [shape: f32[128,32], index: 10, kind: input, shape index: {}]
  %s11 = inlined_call_operand.vmem [shape: f32[1,32], index: 11, kind: input, shape index: {}]
  %s12 = inlined_call_operand.hbm [shape: f32[2,8,32], index: 12, kind: output, shape index: {}]
  %s13 = sld [smem:[#allocation0]]
  $region81: #{tpu_custom_call.1} parent=0
    _
  %s15 = ssub.s32 1, %s13
  %s16 = scalar_select 0, %s15, %s13
  $region1: #{tpu_custom_call.1} parent=0
    #allocation2 [shape = 'u8[8192]{0}', space=vmem, size = 0x2000, scoped, tag = 'output window, operand 0']
    #allocation3 [shape = 's32[2]{0}', space=sflag, size = 0x8, scoped, tag = 'scoped memory for tpu_custom_call.1']
    %17 = vsyncpa [#allocation3], 0
    %s18 = scalar_lea.sflag [#allocation3], 1
    %19 = vsyncpa %s18, 0
    loop: start=0, step=1, limit=4
    $region2: #{tpu_custom_call.1} parent=1 // loop_pre_header
      _
    $region3: #{tpu_custom_call.1} parent=1 // loop_header
      %s21 = sphi 0, %s25
      %p22 = scmp.ge.s32.totalorder %s21, 4
      %s31 = sphi 0, %s33
      %s34 = sphi 0, %s31
      %s35 = sphi 0, %s34
      %s51 = sphi 0, %s35
      %s55 = sphi 0, %s55
      %s57 = sphi 0, %s55
      %s58 = sphi 0, %s57
      %s72 = sphi 0, %s58
      %s76 = sphi 0, %s76
      %s78 = sphi 0, %s76
      %s79 = sphi 0, %s78
      %s93 = sphi 0, %s79
      %s97 = sphi 0, %s97
      %s99 = sphi 0, %s97
      %s100 = sphi 0, %s99
      %s114 = sphi 0, %s100
      %s118 = sphi 0, %s118
      %s120 = sphi 0, %s118
      %s121 = sphi 0, %s120
      %s135 = sphi 0, %s121
      %s139 = sphi 0, %s139
      %s141 = sphi 0, %s139
      %s142 = sphi 0, %s141
      %s156 = sphi 0, %s142
      %s160 = sphi 0, %s160
      %s162 = sphi 0, %s160
      %s163 = sphi 0, %s162
      %s177 = sphi 0, %s163
      %s181 = sphi 0, %s181
      %s183 = sphi 0, %s181
      %s184 = sphi 0, %s183
      %s198 = sphi 0, %s184
      %s202 = sphi 0, %s202
      %s204 = sphi 0, %s202
      %s205 = sphi 0, %s204
      %s219 = sphi 0, %s205
      %s223 = sphi 0, %s223
      %s225 = sphi 0, %s223
      %s226 = sphi 0, %s225
      %s240 = sphi 0, %s226
      %s244 = sphi 0, %s244
      %s246 = sphi 0, %s244
      %s247 = sphi 0, %s246
      %s261 = sphi 0, %s247
      %s265 = sphi 0, %s265
      %s267 = sphi 0, %s265
      %s268 = sphi 0, %s267
      %s282 = sphi 0, %s268
      %s288 = sphi 0, %s290
      %s291 = sphi 0, %s288
      %s292 = sphi 0, %s291
      %s308 = sphi 0, %s292
    $region4: #{tpu_custom_call.1} parent=1 // loop_header_branch
      %24 = sbr.rel (%p22) target = $region8
    $region5: #{tpu_custom_call.1} parent=1 // loop_body
      %s26 = ssub.s32 %s21, 1
      %s27 = ssub.s32 %s21, 2
      %s28 = sadd.s32 %s21, 1
      %s29 = ssub.s32 %s21, %s28
      %p30 = scmp.eq.s32.totalorder %s29, 0
      %s32 = sadd.s32 %s31, 1
      %s33 = scalar_select %p30, %s31, %s32
      %p36 = pneg %p30
      %p37 = scmp.eq.s32.totalorder %s21, 1
      %p38 = por %p36, %p37
      %p39 = scmp.ne.s32.totalorder %s31, %s34
      %p40 = scmp.eq.s32.totalorder %s21, 0
      %p41 = por %p39, %p40
      %p42 = scmp.ne.s32.totalorder %s31, %s34
      %p43 = scmp.eq.s32.totalorder %s26, 1
      %p44 = por %p42, %p43
      %p45 = scmp.ne.s32.totalorder %s34, %s35
      %p46 = scmp.eq.s32.totalorder %s26, 0
      %p47 = por %p45, %p46
      %p48 = scmp.ne.s32.totalorder %s34, %s35
      %p49 = scmp.eq.s32.totalorder %s27, 1
      %p50 = por %p48, %p49
      %p52 = scmp.ne.s32.totalorder %s35, %s51
      %p53 = scmp.eq.s32.totalorder %s27, 0
      %p54 = por %p52, %p53
      %s56 = sadd.s32 %s55, 1
      %p59 = scmp.eq.s32.totalorder %s21, 1
      %p60 = scmp.ne.s32.totalorder %s55, %s57
      %p61 = scmp.eq.s32.totalorder %s21, 0
      %p62 = por %p60, %p61
      %p63 = scmp.ne.s32.totalorder %s55, %s57
      %p64 = scmp.eq.s32.totalorder %s26, 1
      %p65 = por %p63, %p64
      %p66 = scmp.ne.s32.totalorder %s57, %s58
      %p67 = scmp.eq.s32.totalorder %s26, 0
      %p68 = por %p66, %p67
      %p69 = scmp.ne.s32.totalorder %s57, %s58
      %p70 = scmp.eq.s32.totalorder %s27, 1
      %p71 = por %p69, %p70
      %p73 = scmp.ne.s32.totalorder %s58, %s72
      %p74 = scmp.eq.s32.totalorder %s27, 0
      %p75 = por %p73, %p74
      %s77 = sadd.s32 %s76, 1
      %p80 = scmp.eq.s32.totalorder %s21, 1
      %p81 = scmp.ne.s32.totalorder %s76, %s78
      %p82 = scmp.eq.s32.totalorder %s21, 0
      %p83 = por %p81, %p82
      %p84 = scmp.ne.s32.totalorder %s76, %s78
      %p85 = scmp.eq.s32.totalorder %s26, 1
      %p86 = por %p84, %p85
      %p87 = scmp.ne.s32.totalorder %s78, %s79
      %p88 = scmp.eq.s32.totalorder %s26, 0
      %p89 = por %p87, %p88
      %p90 = scmp.ne.s32.totalorder %s78, %s79
      %p91 = scmp.eq.s32.totalorder %s27, 1
      %p92 = por %p90, %p91
      %p94 = scmp.ne.s32.totalorder %s79, %s93
      %p95 = scmp.eq.s32.totalorder %s27, 0
      %p96 = por %p94, %p95
      %s98 = sadd.s32 %s97, 1
      %p101 = scmp.eq.s32.totalorder %s21, 1
      %p102 = scmp.ne.s32.totalorder %s97, %s99
      %p103 = scmp.eq.s32.totalorder %s21, 0
      %p104 = por %p102, %p103
      %p105 = scmp.ne.s32.totalorder %s97, %s99
      %p106 = scmp.eq.s32.totalorder %s26, 1
      %p107 = por %p105, %p106
      %p108 = scmp.ne.s32.totalorder %s99, %s100
      %p109 = scmp.eq.s32.totalorder %s26, 0
      %p110 = por %p108, %p109
      %p111 = scmp.ne.s32.totalorder %s99, %s100
      %p112 = scmp.eq.s32.totalorder %s27, 1
      %p113 = por %p111, %p112
      %p115 = scmp.ne.s32.totalorder %s100, %s114
      %p116 = scmp.eq.s32.totalorder %s27, 0
      %p117 = por %p115, %p116
      %s119 = sadd.s32 %s118, 1
      %p122 = scmp.eq.s32.totalorder %s21, 1
      %p123 = scmp.ne.s32.totalorder %s118, %s120
      %p124 = scmp.eq.s32.totalorder %s21, 0
      %p125 = por %p123, %p124
      %p126 = scmp.ne.s32.totalorder %s118, %s120
      %p127 = scmp.eq.s32.totalorder %s26, 1
      %p128 = por %p126, %p127
      %p129 = scmp.ne.s32.totalorder %s120, %s121
      %p130 = scmp.eq.s32.totalorder %s26, 0
      %p131 = por %p129, %p130
      %p132 = scmp.ne.s32.totalorder %s120, %s121
      %p133 = scmp.eq.s32.totalorder %s27, 1
      %p134 = por %p132, %p133
      %p136 = scmp.ne.s32.totalorder %s121, %s135
      %p137 = scmp.eq.s32.totalorder %s27, 0
      %p138 = por %p136, %p137
      %s140 = sadd.s32 %s139, 1
      %p143 = scmp.eq.s32.totalorder %s21, 1
      %p144 = scmp.ne.s32.totalorder %s139, %s141
      %p145 = scmp.eq.s32.totalorder %s21, 0
      %p146 = por %p144, %p145
      %p147 = scmp.ne.s32.totalorder %s139, %s141
      %p148 = scmp.eq.s32.totalorder %s26, 1
      %p149 = por %p147, %p148
      %p150 = scmp.ne.s32.totalorder %s141, %s142
      %p151 = scmp.eq.s32.totalorder %s26, 0
      %p152 = por %p150, %p151
      %p153 = scmp.ne.s32.totalorder %s141, %s142
      %p154 = scmp.eq.s32.totalorder %s27, 1
      %p155 = por %p153, %p154
      %p157 = scmp.ne.s32.totalorder %s142, %s156
      %p158 = scmp.eq.s32.totalorder %s27, 0
      %p159 = por %p157, %p158
      %s161 = sadd.s32 %s160, 1
      %p164 = scmp.eq.s32.totalorder %s21, 1
      %p165 = scmp.ne.s32.totalorder %s160, %s162
      %p166 = scmp.eq.s32.totalorder %s21, 0
      %p167 = por %p165, %p166
      %p168 = scmp.ne.s32.totalorder %s160, %s162
      %p169 = scmp.eq.s32.totalorder %s26, 1
      %p170 = por %p168, %p169
      %p171 = scmp.ne.s32.totalorder %s162, %s163
      %p172 = scmp.eq.s32.totalorder %s26, 0
      %p173 = por %p171, %p172
      %p174 = scmp.ne.s32.totalorder %s162, %s163
      %p175 = scmp.eq.s32.totalorder %s27, 1
      %p176 = por %p174, %p175
      %p178 = scmp.ne.s32.totalorder %s163, %s177
      %p179 = scmp.eq.s32.totalorder %s27, 0
      %p180 = por %p178, %p179
      %s182 = sadd.s32 %s181, 1
      %p185 = scmp.eq.s32.totalorder %s21, 1
      %p186 = scmp.ne.s32.totalorder %s181, %s183
      %p187 = scmp.eq.s32.totalorder %s21, 0
      %p188 = por %p186, %p187
      %p189 = scmp.ne.s32.totalorder %s181, %s183
      %p190 = scmp.eq.s32.totalorder %s26, 1
      %p191 = por %p189, %p190
      %p192 = scmp.ne.s32.totalorder %s183, %s184
      %p193 = scmp.eq.s32.totalorder %s26, 0
      %p194 = por %p192, %p193
      %p195 = scmp.ne.s32.totalorder %s183, %s184
      %p196 = scmp.eq.s32.totalorder %s27, 1
      %p197 = por %p195, %p196
      %p199 = scmp.ne.s32.totalorder %s184, %s198
      %p200 = scmp.eq.s32.totalorder %s27, 0
      %p201 = por %p199, %p200
      %s203 = sadd.s32 %s202, 1
      %p206 = scmp.eq.s32.totalorder %s21, 1
      %p207 = scmp.ne.s32.totalorder %s202, %s204
      %p208 = scmp.eq.s32.totalorder %s21, 0
      %p209 = por %p207, %p208
      %p210 = scmp.ne.s32.totalorder %s202, %s204
      %p211 = scmp.eq.s32.totalorder %s26, 1
      %p212 = por %p210, %p211
      %p213 = scmp.ne.s32.totalorder %s204, %s205
      %p214 = scmp.eq.s32.totalorder %s26, 0
      %p215 = por %p213, %p214
      %p216 = scmp.ne.s32.totalorder %s204, %s205
      %p217 = scmp.eq.s32.totalorder %s27, 1
      %p218 = por %p216, %p217
      %p220 = scmp.ne.s32.totalorder %s205, %s219
      %p221 = scmp.eq.s32.totalorder %s27, 0
      %p222 = por %p220, %p221
      %s224 = sadd.s32 %s223, 1
      %p227 = scmp.eq.s32.totalorder %s21, 1
      %p228 = scmp.ne.s32.totalorder %s223, %s225
      %p229 = scmp.eq.s32.totalorder %s21, 0
      %p230 = por %p228, %p229
      %p231 = scmp.ne.s32.totalorder %s223, %s225
      %p232 = scmp.eq.s32.totalorder %s26, 1
      %p233 = por %p231, %p232
      %p234 = scmp.ne.s32.totalorder %s225, %s226
      %p235 = scmp.eq.s32.totalorder %s26, 0
      %p236 = por %p234, %p235
      %p237 = scmp.ne.s32.totalorder %s225, %s226
      %p238 = scmp.eq.s32.totalorder %s27, 1
      %p239 = por %p237, %p238
      %p241 = scmp.ne.s32.totalorder %s226, %s240
      %p242 = scmp.eq.s32.totalorder %s27, 0
      %p243 = por %p241, %p242
      %s245 = sadd.s32 %s244, 1
      %p248 = scmp.eq.s32.totalorder %s21, 1
      %p249 = scmp.ne.s32.totalorder %s244, %s246
      %p250 = scmp.eq.s32.totalorder %s21, 0
      %p251 = por %p249, %p250
      %p252 = scmp.ne.s32.totalorder %s244, %s246
      %p253 = scmp.eq.s32.totalorder %s26, 1
      %p254 = por %p252, %p253
      %p255 = scmp.ne.s32.totalorder %s246, %s247
      %p256 = scmp.eq.s32.totalorder %s26, 0
      %p257 = por %p255, %p256
      %p258 = scmp.ne.s32.totalorder %s246, %s247
      %p259 = scmp.eq.s32.totalorder %s27, 1
      %p260 = por %p258, %p259
      %p262 = scmp.ne.s32.totalorder %s247, %s261
      %p263 = scmp.eq.s32.totalorder %s27, 0
      %p264 = por %p262, %p263
      %s266 = sadd.s32 %s265, 1
      %p269 = scmp.eq.s32.totalorder %s21, 1
      %p270 = scmp.ne.s32.totalorder %s265, %s267
      %p271 = scmp.eq.s32.totalorder %s21, 0
      %p272 = por %p270, %p271
      %p273 = scmp.ne.s32.totalorder %s265, %s267
      %p274 = scmp.eq.s32.totalorder %s26, 1
      %p275 = por %p273, %p274
      %p276 = scmp.ne.s32.totalorder %s267, %s268
      %p277 = scmp.eq.s32.totalorder %s26, 0
      %p278 = por %p276, %p277
      %p279 = scmp.ne.s32.totalorder %s267, %s268
      %p280 = scmp.eq.s32.totalorder %s27, 1
      %p281 = por %p279, %p280
      %p283 = scmp.ne.s32.totalorder %s268, %s282
      %p284 = scmp.eq.s32.totalorder %s27, 0
      %p285 = por %p283, %p284
      %s286 = ssub.s32 %s21, %s28
      %p287 = scmp.eq.s32.totalorder %s286, 0
      %s289 = sadd.s32 %s288, 1
      %s290 = scalar_select %p287, %s288, %s289
      %p293 = pneg %p287
      %p294 = scmp.eq.s32.totalorder %s21, 1
      %p295 = por %p293, %p294
      %p296 = scmp.ne.s32.totalorder %s288, %s291
      %p297 = scmp.eq.s32.totalorder %s21, 0
      %p298 = por %p296, %p297
      %p299 = scmp.ne.s32.totalorder %s288, %s291
      %p300 = scmp.eq.s32.totalorder %s26, 1
      %p301 = por %p299, %p300
      %p302 = scmp.ne.s32.totalorder %s291, %s292
      %p303 = scmp.eq.s32.totalorder %s26, 0
      %p304 = por %p302, %p303
      %p305 = scmp.ne.s32.totalorder %s291, %s292
      %p306 = scmp.eq.s32.totalorder %s27, 1
      %p307 = por %p305, %p306
      %p309 = scmp.ne.s32.totalorder %s292, %s308
      %p310 = scmp.eq.s32.totalorder %s27, 0
      %p311 = por %p309, %p310
      %p312 = scmp.le.s32.totalorder 1, %s21
      %p313 = scmp.lt.s32.totalorder %s21, 3
      %p314 = pnand %p312, %p313
      %p315 = pneg %p314
      // Predicated region
      $region9: #{tpu_custom_call.1} parent=5 // pred_check
        _
      $region10: #{tpu_custom_call.1} parent=5 // pred_check_branch
        %317 = sbr.rel (%p314) target = $region12
      $region11: #{tpu_custom_call.1} parent=5 // pred_region
        %s318 = ssub.s32 %s21, 1
        // Predicated region
        $region13: #{tpu_custom_call.1} parent=11 // pred_check
          %p319 = pneg %p68
        $region14: #{tpu_custom_call.1} parent=11 // pred_check_branch
          %321 = sbr.rel (%p319) target = $region16
        $region15: #{tpu_custom_call.1} parent=11 // pred_region
          _
        $region16: #{tpu_custom_call.1} parent=11 // pred_fallthru
          _
        // Predicated region
        $region17: #{tpu_custom_call.1} parent=11 // pred_check
          %p322 = pneg %p89
        $region18: #{tpu_custom_call.1} parent=11 // pred_check_branch
          %324 = sbr.rel (%p322) target = $region20
        $region19: #{tpu_custom_call.1} parent=11 // pred_region
          _
        $region20: #{tpu_custom_call.1} parent=11 // pred_fallthru
          _
        // Predicated region
        $region21: #{tpu_custom_call.1} parent=11 // pred_check
          %p325 = pneg %p110
        $region22: #{tpu_custom_call.1} parent=11 // pred_check_branch
          %327 = sbr.rel (%p325) target = $region24
        $region23: #{tpu_custom_call.1} parent=11 // pred_region
          _
        $region24: #{tpu_custom_call.1} parent=11 // pred_fallthru
          _
        // Predicated region
        $region25: #{tpu_custom_call.1} parent=11 // pred_check
          %p328 = pneg %p131
        $region26: #{tpu_custom_call.1} parent=11 // pred_check_branch
          %330 = sbr.rel (%p328) target = $region28
        $region27: #{tpu_custom_call.1} parent=11 // pred_region
          _
        $region28: #{tpu_custom_call.1} parent=11 // pred_fallthru
          _
        // Predicated region
        $region29: #{tpu_custom_call.1} parent=11 // pred_check
          %p331 = pneg %p152
        $region30: #{tpu_custom_call.1} parent=11 // pred_check_branch
          %333 = sbr.rel (%p331) target = $region32
        $region31: #{tpu_custom_call.1} parent=11 // pred_region
          _
        $region32: #{tpu_custom_call.1} parent=11 // pred_fallthru
          _
        // Predicated region
        $region33: #{tpu_custom_call.1} parent=11 // pred_check
          %p334 = pneg %p173
        $region34: #{tpu_custom_call.1} parent=11 // pred_check_branch
          %336 = sbr.rel (%p334) target = $region36
        $region35: #{tpu_custom_call.1} parent=11 // pred_region
          _
        $region36: #{tpu_custom_call.1} parent=11 // pred_fallthru
          _
        // Predicated region
        $region37: #{tpu_custom_call.1} parent=11 // pred_check
          %p337 = pneg %p194
        $region38: #{tpu_custom_call.1} parent=11 // pred_check_branch
          %339 = sbr.rel (%p337) target = $region40
        $region39: #{tpu_custom_call.1} parent=11 // pred_region
          _
        $region40: #{tpu_custom_call.1} parent=11 // pred_fallthru
          _
        // Predicated region
        $region41: #{tpu_custom_call.1} parent=11 // pred_check
          %p340 = pneg %p215
        $region42: #{tpu_custom_call.1} parent=11 // pred_check_branch
          %342 = sbr.rel (%p340) target = $region44
        $region43: #{tpu_custom_call.1} parent=11 // pred_region
          _
        $region44: #{tpu_custom_call.1} parent=11 // pred_fallthru
          _
        // Predicated region
        $region45: #{tpu_custom_call.1} parent=11 // pred_check
          %p343 = pneg %p236
        $region46: #{tpu_custom_call.1} parent=11 // pred_check_branch
          %345 = sbr.rel (%p343) target = $region48
        $region47: #{tpu_custom_call.1} parent=11 // pred_region
          _
        $region48: #{tpu_custom_call.1} parent=11 // pred_fallthru
          _
        // Predicated region
        $region49: #{tpu_custom_call.1} parent=11 // pred_check
          %p346 = pneg %p257
        $region50: #{tpu_custom_call.1} parent=11 // pred_check_branch
          %348 = sbr.rel (%p346) target = $region52
        $region51: #{tpu_custom_call.1} parent=11 // pred_region
          _
        $region52: #{tpu_custom_call.1} parent=11 // pred_fallthru
          _
        // Predicated region
        $region53: #{tpu_custom_call.1} parent=11 // pred_check
          %p349 = pneg %p278
        $region54: #{tpu_custom_call.1} parent=11 // pred_check_branch
          %351 = sbr.rel (%p349) target = $region56
        $region55: #{tpu_custom_call.1} parent=11 // pred_region
          _
        $region56: #{tpu_custom_call.1} parent=11 // pred_fallthru
          _
      $region12: #{tpu_custom_call.1} parent=5 // pred_fallthru
        _
      %p352 = scmp.lt.s32.totalorder %s21, 2
      // Predicated region
      $region57: #{tpu_custom_call.1} parent=5 // pred_check
        %p353 = pneg %p352
      $region58: #{tpu_custom_call.1} parent=5 // pred_check_branch
        %355 = sbr.rel (%p353) target = $region60
      $region59: #{tpu_custom_call.1} parent=5 // pred_region
        // Predicated region
        $region61: #{tpu_custom_call.1} parent=59 // pred_check
          %p356 = pneg %p41
        $region62: #{tpu_custom_call.1} parent=59 // pred_check_branch
          %358 = sbr.rel (%p356) target = $region64
        $region63: #{tpu_custom_call.1} parent=59 // pred_region
          %p359 = scmp.lt.s32.totalorder %s21, 1
          %s360 = scalar_select %p359, %s21, 1
          %s361 = smul.addr %s360, 8
          %s362 = scalar_lea.vmem %s0, %s361
        $region64: #{tpu_custom_call.1} parent=59 // pred_fallthru
          _
      $region60: #{tpu_custom_call.1} parent=5 // pred_fallthru
        _
      %p363 = scmp.le.s32.totalorder 1, %s21
      %p364 = scmp.lt.s32.totalorder %s21, 3
      %p365 = pnand %p363, %p364
      %p366 = pneg %p365
      // Predicated region
      $region65: #{tpu_custom_call.1} parent=5 // pred_check
        _
      $region66: #{tpu_custom_call.1} parent=5 // pred_check_branch
        %368 = sbr.rel (%p365) target = $region68
      $region67: #{tpu_custom_call.1} parent=5 // pred_region
        %s369 = ssub.s32 %s21, 1
        %p370 = scmp.lt.s32.totalorder %s26, 1
        %s371 = scalar_select %p370, %s26, 1
        %s372 = smul.addr %s371, 8
        %s373 = scalar_lea.vmem %s0, %s372
        %p374 = pneg %p47
        %p375 = pneg %p44
        %p376 = pneg %p68
        %p377 = pneg %p65
        %p378 = pneg %p89
        %p379 = pneg %p86
        %p380 = pneg %p110
        %p381 = pneg %p107
        %p382 = pneg %p131
        %p383 = pneg %p128
        %p384 = pneg %p152
        %p385 = pneg %p149
        %p386 = pneg %p173
        %p387 = pneg %p170
        %p388 = pneg %p194
        %p389 = pneg %p191
        %p390 = pneg %p215
        %p391 = pneg %p212
        %p392 = pneg %p236
        %p393 = pneg %p233
        %p394 = pneg %p257
        %p395 = pneg %p254
        %p396 = pneg %p278
        %p397 = pneg %p275
        %p398 = pneg %p304
        %p399 = pneg %p301
        %s400 = sand.u32 %s291, 1
        %s401 = scalar_lea.sflag [#allocation3], %s400
        %s402 = sand.u32 %s291, 1
        %s403 = smul.addr %s402, 8
        %s404 = scalar_lea.vmem [#allocation2], %s403
        %p405 = scmp.lt.s32.totalorder %s26, 1
        %s406 = scalar_select %p405, %s26, 1
        %s407 = smul.addr %s406, 8
        %s408 = scalar_lea.vmem %s0, %s407
        %v409 = vld [vmem:[%s408] sm:$0xff]
        %v410 = vld [vmem:[%s4] sm:$0x1]
        %v411 = vld [vmem:[%s5] sm:$0x1]
        %vm412 = vcmask 261120
        %v413 = vsel %vm412, %v409, 0.0
        %414 = vadd.xlane.f32.xlu0 %v413
        %v415 = vpop.xlane.xlu0 %414
        %v416 = vrcp.pop 32.0
        %v417 = vmul.f32 %v415, %v416
        %v418 = vsub.f32 %v409, %v417
        %v419 = vmul.f32 %v418, %v418
        %v420 = vsel %vm412, %v419, 0.0
        %421 = vadd.xlane.f32.xlu0 %v420
        %v422 = vpop.xlane.xlu0 %421
        %v423 = vmul.f32 %v422, %v416
        %v424 = vadd.f32 %v423, 1e-05
        %v425 = vrsqrt.pop %v424
        %v426 = vmul.f32 %v418, %v425
        %v428 = vlaneseq
        %v429 = vshrl.u32 %v428, 7
        %v430 = vsub.s32 0, %v429
        %v431 = vrot.slane %v410, %v430
        %v433 = vmul.f32 %v426, %v431
        %v435 = vlaneseq
        %v436 = vshrl.u32 %v435, 7
        %v437 = vsub.s32 0, %v436
        %v438 = vrot.slane %v411, %v437
        %v440 = vadd.f32 %v433, %v438
        %v441 = vld [vmem:[%s1] sm:$0xff]
        %v442 = vld [vmem:[%s1 + $0x8] sm:$0xff]
        %v443 = vld [vmem:[%s1 + $0x10] sm:$0xff]
        %v444 = vld [vmem:[%s1 + $0x18] sm:$0xff]
        %v446 = vsel %vm412, %v440, 0
        %448 = vmatprep.subr.mxu0 0.0
        %449 = vmatpush1.msra.mxu0 %v441
        %450 = vmatprep.subr.mxu0 0.0
        %451 = vmatpush1.msra.mxu0 %v442
        %452 = vmatprep.subr.mxu0 0.0
        %453 = vmatpush1.msra.mxu0 %v443
        %454 = vmatprep.subr.mxu0 0.0
        %455 = vmatpush1.msra.mxu0 %v444
        %456 = vmatprep.subr.mxu0 0.0
        %457 = vmatpush1.msra.mxu0 0.0
        %458 = vmatprep.subr.mxu0 0.0
        %459 = vmatpush1.msra.mxu0 0.0
        %460 = vmatprep.subr.mxu0 0.0
        %461 = vmatpush1.msra.mxu0 0.0
        %462 = vmatprep.subr.mxu0 0.0
        %463 = vmatpush1.msra.mxu0 0.0
        %464 = vmatprep.subr.mxu0 0.0
        %465 = vmatpush1.msra.mxu0 0.0
        %466 = vmatprep.subr.mxu0 0.0
        %467 = vmatpush1.msra.mxu0 0.0
        %468 = vmatprep.subr.mxu0 0.0
        %469 = vmatpush1.msra.mxu0 0.0
        %470 = vmatprep.subr.mxu0 0.0
        %471 = vmatpush1.msra.mxu0 0.0
        %472 = vmatprep.subr.mxu0 0.0
        %473 = vmatpush1.msra.mxu0 0.0
        %474 = vmatprep.subr.mxu0 0.0
        %475 = vmatpush1.msra.mxu0 0.0
        %476 = vmatprep.subr.mxu0 0.0
        %477 = vmatpush1.msra.mxu0 0.0
        %478 = vmatprep.subr.mxu0 0.0
        %479 = vmatpush1.msra.mxu0 0.0
        %480 = vmatprep.subr.mxu0 0.0
        %481 = vmatpush1.msra.mxu0 0.0
        %482 = vmatprep.subr.mxu0 0.0
        %483 = vmatpush1.msra.mxu0 0.0
        %484 = vmatprep.subr.mxu0 0.0
        %485 = vmatpush1.msra.mxu0 0.0
        %486 = vmatprep.subr.mxu0 0.0
        %487 = vmatpush1.msra.mxu0 0.0
        %488 = vmatprep.subr.mxu0 0.0
        %489 = vmatpush1.msra.mxu0 0.0
        %490 = vmatprep.subr.mxu0 0.0
        %491 = vmatpush1.msra.mxu0 0.0
        %492 = vmatprep.subr.mxu0 0.0
        %493 = vmatpush1.msra.mxu0 0.0
        %494 = vmatprep.subr.mxu0 0.0
        %495 = vmatpush1.msra.mxu0 0.0
        %496 = vmatprep.subr.mxu0 0.0
        %497 = vmatpush1.msra.mxu0 0.0
        %498 = vmatprep.subr.mxu0 0.0
        %499 = vmatpush1.msra.mxu0 0.0
        %500 = vmatprep.subr.mxu0 0.0
        %501 = vmatpush1.msra.mxu0 0.0
        %502 = vmatprep.subr.mxu0 0.0
        %503 = vmatpush1.msra.mxu0 0.0
        %504 = vmatprep.subr.mxu0 0.0
        %505 = vmatpush1.msra.mxu0 0.0
        %506 = vmatprep.subr.mxu0 0.0
        %507 = vmatpush1.msra.mxu0 0.0
        %508 = vmatprep.subr.mxu0 0.0
        %509 = vmatpush1.msra.mxu0 0.0
        %510 = vmatprep.subr.mxu0 0.0
        %511 = vmatpush1.msra.mxu0 0.0
        %512 = vmatprep.mubr.f32.mxu0 0.0
        %513 = vmatmul.mubr.f32.gmra.mrb[0].mxu0 %v446
        %v514 = vpop.f32.mrb[0].mxu0
        %v515 = vadd.f32 0.0, %v514
        %v516 = vpop.f32.mrb[0].mxu0
        %517 = vdwg.mxu0
        %v518 = vlaneseq
        %v519 = vshrl.u32 %v518, 7
        %v520 = vlaneseq
        %v521 = vand.u32 %v520, 127
        %vm522 = vcmp.ge.s32.totalorder %v519, %v521
        %524 = vrot.lane.b32.xlu0 %v515, 96
        %v525 = vpop.permute.xlu0 %524
        %vm526 = vcmask 64512
        %v527 = vsel %vm526, %v515, 0
        %v529 = vsel %vm526, %v525, 0
        %531 = vmatprep.subr.mxu0 0.0
        %532 = vmatpush1.xpose.msra.mxu0 %v529
        %533 = vmatprep.subr.mxu0 0.0
        %534 = vmatpush1.xpose.msra.mxu0 0.0
        %535 = vmatprep.subr.mxu0 0.0
        %536 = vmatpush1.xpose.msra.mxu0 0.0
        %537 = vmatprep.subr.mxu0 0.0
        %538 = vmatpush1.xpose.msra.mxu0 0.0
        %539 = vmatprep.subr.mxu0 0.0
        %540 = vmatpush1.xpose.msra.mxu0 0.0
        %541 = vmatprep.subr.mxu0 0.0
        %542 = vmatpush1.xpose.msra.mxu0 0.0
        %543 = vmatprep.subr.mxu0 0.0
        %544 = vmatpush1.xpose.msra.mxu0 0.0
        %545 = vmatprep.subr.mxu0 0.0
        %546 = vmatpush1.xpose.msra.mxu0 0.0
        %547 = vmatprep.subr.mxu0 0.0
        %548 = vmatpush1.xpose.msra.mxu0 0.0
        %549 = vmatprep.subr.mxu0 0.0
        %550 = vmatpush1.xpose.msra.mxu0 0.0
        %551 = vmatprep.subr.mxu0 0.0
        %552 = vmatpush1.xpose.msra.mxu0 0.0
        %553 = vmatprep.subr.mxu0 0.0
        %554 = vmatpush1.xpose.msra.mxu0 0.0
        %555 = vmatprep.subr.mxu0 0.0
        %556 = vmatpush1.xpose.msra.mxu0 0.0
        %557 = vmatprep.subr.mxu0 0.0
        %558 = vmatpush1.xpose.msra.mxu0 0.0
        %559 = vmatprep.subr.mxu0 0.0
        %560 = vmatpush1.xpose.msra.mxu0 0.0
        %561 = vmatprep.subr.mxu0 0.0
        %562 = vmatpush1.xpose.msra.mxu0 0.0
        %563 = vmatprep.subr.mxu0 0.0
        %564 = vmatpush1.xpose.msra.mxu0 0.0
        %565 = vmatprep.subr.mxu0 0.0
        %566 = vmatpush1.xpose.msra.mxu0 0.0
        %567 = vmatprep.subr.mxu0 0.0
        %568 = vmatpush1.xpose.msra.mxu0 0.0
        %569 = vmatprep.subr.mxu0 0.0
        %570 = vmatpush1.xpose.msra.mxu0 0.0
        %571 = vmatprep.subr.mxu0 0.0
        %572 = vmatpush1.xpose.msra.mxu0 0.0
        %573 = vmatprep.subr.mxu0 0.0
        %574 = vmatpush1.xpose.msra.mxu0 0.0
        %575 = vmatprep.subr.mxu0 0.0
        %576 = vmatpush1.xpose.msra.mxu0 0.0
        %577 = vmatprep.subr.mxu0 0.0
        %578 = vmatpush1.xpose.msra.mxu0 0.0
        %579 = vmatprep.subr.mxu0 0.0
        %580 = vmatpush1.xpose.msra.mxu0 0.0
        %581 = vmatprep.subr.mxu0 0.0
        %582 = vmatpush1.xpose.msra.mxu0 0.0
        %583 = vmatprep.subr.mxu0 0.0
        %584 = vmatpush1.xpose.msra.mxu0 0.0
        %585 = vmatprep.subr.mxu0 0.0
        %586 = vmatpush1.xpose.msra.mxu0 0.0
        %587 = vmatprep.subr.mxu0 0.0
        %588 = vmatpush1.xpose.msra.mxu0 0.0
        %589 = vmatprep.subr.mxu0 0.0
        %590 = vmatpush1.xpose.msra.mxu0 0.0
        %591 = vmatprep.subr.mxu0 0.0
        %592 = vmatpush1.xpose.msra.mxu0 0.0
        %593 = vmatprep.subr.mxu0 0.0
        %594 = vmatpush1.xpose.msra.mxu0 0.0
        %595 = vmatprep.mubr.f32.mxu0 0.0
        %596 = vmatmul.mubr.f32.gmra.mrb[0].mxu0 %v527
        %v597 = vpop.f32.mrb[0].mxu0
        %v598 = vadd.f32 0.0, %v597
        %v599 = vpop.f32.mrb[0].mxu0
        %600 = vdwg.mxu0
        %v601 = vsel %vm522, %v598, -1e+30
        %v602 = vsel %vm526, %v601, -inf
        %603 = vmax.xlane.f32.xlu0 %v602
        %v604 = vpop.xlane.xlu0 %603
        %v605 = vsub.f32 %v601, %v604
        %v606 = vmul.f32 %v605, 1.442695
        %v607 = vpow.pop %v606
        %v608 = vsel %vm526, %v607, 0.0
        %609 = vadd.xlane.f32.xlu0 %v608
        %v610 = vpop.xlane.xlu0 %609
        %v611 = vrcp.pop %v610
        %v612 = vmul.f32 %v607, %v611
        %613 = vrot.lane.b32.xlu0 %v515, 64
        %v614 = vpop.permute.xlu0 %613
        %v617 = vsel %vm526, %v612, 0
        %619 = vmatprep.subr.mxu0 0.0
        %620 = vmatpush1.msra.mxu0 %v614
        %621 = vmatprep.subr.mxu0 0.0
        %622 = vmatpush1.msra.mxu0 0.0
        %623 = vmatprep.subr.mxu0 0.0
        %624 = vmatpush1.msra.mxu0 0.0
        %625 = vmatprep.subr.mxu0 0.0
        %626 = vmatpush1.msra.mxu0 0.0
        %627 = vmatprep.subr.mxu0 0.0
        %628 = vmatpush1.msra.mxu0 0.0
        %629 = vmatprep.subr.mxu0 0.0
        %630 = vmatpush1.msra.mxu0 0.0
        %631 = vmatprep.subr.mxu0 0.0
        %632 = vmatpush1.msra.mxu0 0.0
        %633 = vmatprep.subr.mxu0 0.0
        %634 = vmatpush1.msra.mxu0 0.0
        %635 = vmatprep.subr.mxu0 0.0
        %636 = vmatpush1.msra.mxu0 0.0
        %637 = vmatprep.subr.mxu0 0.0
        %638 = vmatpush1.msra.mxu0 0.0
        %639 = vmatprep.subr.mxu0 0.0
        %640 = vmatpush1.msra.mxu0 0.0
        %641 = vmatprep.subr.mxu0 0.0
        %642 = vmatpush1.msra.mxu0 0.0
        %643 = vmatprep.subr.mxu0 0.0
        %644 = vmatpush1.msra.mxu0 0.0
        %645 = vmatprep.subr.mxu0 0.0
        %646 = vmatpush1.msra.mxu0 0.0
        %647 = vmatprep.subr.mxu0 0.0
        %648 = vmatpush1.msra.mxu0 0.0
        %649 = vmatprep.subr.mxu0 0.0
        %650 = vmatpush1.msra.mxu0 0.0
        %651 = vmatprep.subr.mxu0 0.0
        %652 = vmatpush1.msra.mxu0 0.0
        %653 = vmatprep.subr.mxu0 0.0
        %654 = vmatpush1.msra.mxu0 0.0
        %655 = vmatprep.subr.mxu0 0.0
        %656 = vmatpush1.msra.mxu0 0.0
        %657 = vmatprep.subr.mxu0 0.0
        %658 = vmatpush1.msra.mxu0 0.0
        %659 = vmatprep.subr.mxu0 0.0
        %660 = vmatpush1.msra.mxu0 0.0
        %661 = vmatprep.subr.mxu0 0.0
        %662 = vmatpush1.msra.mxu0 0.0
        %663 = vmatprep.subr.mxu0 0.0
        %664 = vmatpush1.msra.mxu0 0.0
        %665 = vmatprep.subr.mxu0 0.0
        %666 = vmatpush1.msra.mxu0 0.0
        %667 = vmatprep.subr.mxu0 0.0
        %668 = vmatpush1.msra.mxu0 0.0
        %669 = vmatprep.subr.mxu0 0.0
        %670 = vmatpush1.msra.mxu0 0.0
        %671 = vmatprep.subr.mxu0 0.0
        %672 = vmatpush1.msra.mxu0 0.0
        %673 = vmatprep.subr.mxu0 0.0
        %674 = vmatpush1.msra.mxu0 0.0
        %675 = vmatprep.subr.mxu0 0.0
        %676 = vmatpush1.msra.mxu0 0.0
        %677 = vmatprep.subr.mxu0 0.0
        %678 = vmatpush1.msra.mxu0 0.0
        %679 = vmatprep.subr.mxu0 0.0
        %680 = vmatpush1.msra.mxu0 0.0
        %681 = vmatprep.subr.mxu0 0.0
        %682 = vmatpush1.msra.mxu0 0.0
        %683 = vmatprep.mubr.f32.mxu0 0.0
        %684 = vmatmul.mubr.f32.gmra.mrb[0].mxu0 %v617
        %v685 = vpop.f32.mrb[0].mxu0
        %v686 = vadd.f32 0.0, %v685
        %v687 = vpop.f32.mrb[0].mxu0
        %688 = vdwg.mxu0
        %v689 = vld [vmem:[%s2] sm:$0xff]
        %690 = vrot.lane.b32.xlu0 %v515, 120
        %v691 = vpop.permute.xlu0 %690
        %692 = vrot.lane.b32.xlu0 %v515, 88
        %v693 = vpop.permute.xlu0 %692
        %v694 = vsel %vm526, %v691, 0
        %v696 = vsel %vm526, %v693, 0
        %698 = vmatprep.subr.mxu0 0.0
        %699 = vmatpush1.xpose.msra.mxu0 %v696
        %700 = vmatprep.subr.mxu0 0.0
        %701 = vmatpush1.xpose.msra.mxu0 0.0
        %702 = vmatprep.subr.mxu0 0.0
        %703 = vmatpush1.xpose.msra.mxu0 0.0
        %704 = vmatprep.subr.mxu0 0.0
        %705 = vmatpush1.xpose.msra.mxu0 0.0
        %706 = vmatprep.subr.mxu0 0.0
        %707 = vmatpush1.xpose.msra.mxu0 0.0
        %708 = vmatprep.subr.mxu0 0.0
        %709 = vmatpush1.xpose.msra.mxu0 0.0
        %710 = vmatprep.subr.mxu0 0.0
        %711 = vmatpush1.xpose.msra.mxu0 0.0
        %712 = vmatprep.subr.mxu0 0.0
        %713 = vmatpush1.xpose.msra.mxu0 0.0
        %714 = vmatprep.subr.mxu0 0.0
        %715 = vmatpush1.xpose.msra.mxu0 0.0
        %716 = vmatprep.subr.mxu0 0.0
        %717 = vmatpush1.xpose.msra.mxu0 0.0
        %718 = vmatprep.subr.mxu0 0.0
        %719 = vmatpush1.xpose.msra.mxu0 0.0
        %720 = vmatprep.subr.mxu0 0.0
        %721 = vmatpush1.xpose.msra.mxu0 0.0
        %722 = vmatprep.subr.mxu0 0.0
        %723 = vmatpush1.xpose.msra.mxu0 0.0
        %724 = vmatprep.subr.mxu0 0.0
        %725 = vmatpush1.xpose.msra.mxu0 0.0
        %726 = vmatprep.subr.mxu0 0.0
        %727 = vmatpush1.xpose.msra.mxu0 0.0
        %728 = vmatprep.subr.mxu0 0.0
        %729 = vmatpush1.xpose.msra.mxu0 0.0
        %730 = vmatprep.subr.mxu0 0.0
        %731 = vmatpush1.xpose.msra.mxu0 0.0
        %732 = vmatprep.subr.mxu0 0.0
        %733 = vmatpush1.xpose.msra.mxu0 0.0
        %734 = vmatprep.subr.mxu0 0.0
        %735 = vmatpush1.xpose.msra.mxu0 0.0
        %736 = vmatprep.subr.mxu0 0.0
        %737 = vmatpush1.xpose.msra.mxu0 0.0
        %738 = vmatprep.subr.mxu0 0.0
        %739 = vmatpush1.xpose.msra.mxu0 0.0
        %740 = vmatprep.subr.mxu0 0.0
        %741 = vmatpush1.xpose.msra.mxu0 0.0
        %742 = vmatprep.subr.mxu0 0.0
        %743 = vmatpush1.xpose.msra.mxu0 0.0
        %744 = vmatprep.subr.mxu0 0.0
        %745 = vmatpush1.xpose.msra.mxu0 0.0
        %746 = vmatprep.subr.mxu0 0.0
        %747 = vmatpush1.xpose.msra.mxu0 0.0
        %748 = vmatprep.subr.mxu0 0.0
        %749 = vmatpush1.xpose.msra.mxu0 0.0
        %750 = vmatprep.subr.mxu0 0.0
        %751 = vmatpush1.xpose.msra.mxu0 0.0
        %752 = vmatprep.subr.mxu0 0.0
        %753 = vmatpush1.xpose.msra.mxu0 0.0
        %754 = vmatprep.subr.mxu0 0.0
        %755 = vmatpush1.xpose.msra.mxu0 0.0
        %756 = vmatprep.subr.mxu0 0.0
        %757 = vmatpush1.xpose.msra.mxu0 0.0
        %758 = vmatprep.subr.mxu0 0.0
        %759 = vmatpush1.xpose.msra.mxu0 0.0
        %760 = vmatprep.subr.mxu0 0.0
        %761 = vmatpush1.xpose.msra.mxu0 0.0
        %762 = vmatprep.mubr.f32.mxu0 0.0
        %763 = vmatmul.mubr.f32.gmra.mrb[0].mxu0 %v694
        %v764 = vpop.f32.mrb[0].mxu0
        %v765 = vadd.f32 0.0, %v764
        %v766 = vpop.f32.mrb[0].mxu0
        %767 = vdwg.mxu0
        %v768 = vsel %vm522, %v765, -1e+30
        %v769 = vsel %vm526, %v768, -inf
        %770 = vmax.xlane.f32.xlu0 %v769
        %v771 = vpop.xlane.xlu0 %770
        %v772 = vsub.f32 %v768, %v771
        %v773 = vmul.f32 %v772, 1.442695
        %v774 = vpow.pop %v773
        %v775 = vsel %vm526, %v774, 0.0
        %776 = vadd.xlane.f32.xlu0 %v775
        %v777 = vpop.xlane.xlu0 %776
        %v778 = vrcp.pop %v777
        %v779 = vmul.f32 %v774, %v778
        %780 = vrot.lane.b32.xlu0 %v515, 56
        %v781 = vpop.permute.xlu0 %780
        %v784 = vsel %vm526, %v779, 0
        %786 = vmatprep.subr.mxu0 0.0
        %787 = vmatpush1.msra.mxu0 %v781
        %788 = vmatprep.subr.mxu0 0.0
        %789 = vmatpush1.msra.mxu0 0.0
        %790 = vmatprep.subr.mxu0 0.0
        %791 = vmatpush1.msra.mxu0 0.0
        %792 = vmatprep.subr.mxu0 0.0
        %793 = vmatpush1.msra.mxu0 0.0
        %794 = vmatprep.subr.mxu0 0.0
        %795 = vmatpush1.msra.mxu0 0.0
        %796 = vmatprep.subr.mxu0 0.0
        %797 = vmatpush1.msra.mxu0 0.0
        %798 = vmatprep.subr.mxu0 0.0
        %799 = vmatpush1.msra.mxu0 0.0
        %800 = vmatprep.subr.mxu0 0.0
        %801 = vmatpush1.msra.mxu0 0.0
        %802 = vmatprep.subr.mxu0 0.0
        %803 = vmatpush1.msra.mxu0 0.0
        %804 = vmatprep.subr.mxu0 0.0
        %805 = vmatpush1.msra.mxu0 0.0
        %806 = vmatprep.subr.mxu0 0.0
        %807 = vmatpush1.msra.mxu0 0.0
        %808 = vmatprep.subr.mxu0 0.0
        %809 = vmatpush1.msra.mxu0 0.0
        %810 = vmatprep.subr.mxu0 0.0
        %811 = vmatpush1.msra.mxu0 0.0
        %812 = vmatprep.subr.mxu0 0.0
        %813 = vmatpush1.msra.mxu0 0.0
        %814 = vmatprep.subr.mxu0 0.0
        %815 = vmatpush1.msra.mxu0 0.0
        %816 = vmatprep.subr.mxu0 0.0
        %817 = vmatpush1.msra.mxu0 0.0
        %818 = vmatprep.subr.mxu0 0.0
        %819 = vmatpush1.msra.mxu0 0.0
        %820 = vmatprep.subr.mxu0 0.0
        %821 = vmatpush1.msra.mxu0 0.0
        %822 = vmatprep.subr.mxu0 0.0
        %823 = vmatpush1.msra.mxu0 0.0
        %824 = vmatprep.subr.mxu0 0.0
        %825 = vmatpush1.msra.mxu0 0.0
        %826 = vmatprep.subr.mxu0 0.0
        %827 = vmatpush1.msra.mxu0 0.0
        %828 = vmatprep.subr.mxu0 0.0
        %829 = vmatpush1.msra.mxu0 0.0
        %830 = vmatprep.subr.mxu0 0.0
        %831 = vmatpush1.msra.mxu0 0.0
        %832 = vmatprep.subr.mxu0 0.0
        %833 = vmatpush1.msra.mxu0 0.0
        %834 = vmatprep.subr.mxu0 0.0
        %835 = vmatpush1.msra.mxu0 0.0
        %836 = vmatprep.subr.mxu0 0.0
        %837 = vmatpush1.msra.mxu0 0.0
        %838 = vmatprep.subr.mxu0 0.0
        %839 = vmatpush1.msra.mxu0 0.0
        %840 = vmatprep.subr.mxu0 0.0
        %841 = vmatpush1.msra.mxu0 0.0
        %842 = vmatprep.subr.mxu0 0.0
        %843 = vmatpush1.msra.mxu0 0.0
        %844 = vmatprep.subr.mxu0 0.0
        %845 = vmatpush1.msra.mxu0 0.0
        %846 = vmatprep.subr.mxu0 0.0
        %847 = vmatpush1.msra.mxu0 0.0
        %848 = vmatprep.subr.mxu0 0.0
        %849 = vmatpush1.msra.mxu0 0.0
        %850 = vmatprep.mubr.f32.mxu0 0.0
        %851 = vmatmul.mubr.f32.gmra.mrb[0].mxu0 %v784
        %v852 = vpop.f32.mrb[0].mxu0
        %v853 = vadd.f32 0.0, %v852
        %v854 = vpop.f32.mrb[0].mxu0
        %855 = vdwg.mxu0
        %v856 = vld [vmem:[%s2 + $0x8] sm:$0xff]
        %v858 = vsel %vm526, %v853, 0
        %860 = vmatprep.subr.mxu0 0.0
        %861 = vmatpush1.msra.mxu0 %v856
        %862 = vmatprep.subr.mxu0 0.0
        %863 = vmatpush1.msra.mxu0 0.0
        %864 = vmatprep.subr.mxu0 0.0
        %865 = vmatpush1.msra.mxu0 0.0
        %866 = vmatprep.subr.mxu0 0.0
        %867 = vmatpush1.msra.mxu0 0.0
        %868 = vmatprep.subr.mxu0 0.0
        %869 = vmatpush1.msra.mxu0 0.0
        %870 = vmatprep.subr.mxu0 0.0
        %871 = vmatpush1.msra.mxu0 0.0
        %872 = vmatprep.subr.mxu0 0.0
        %873 = vmatpush1.msra.mxu0 0.0
        %874 = vmatprep.subr.mxu0 0.0
        %875 = vmatpush1.msra.mxu0 0.0
        %876 = vmatprep.subr.mxu0 0.0
        %877 = vmatpush1.msra.mxu0 0.0
        %878 = vmatprep.subr.mxu0 0.0
        %879 = vmatpush1.msra.mxu0 0.0
        %880 = vmatprep.subr.mxu0 0.0
        %881 = vmatpush1.msra.mxu0 0.0
        %882 = vmatprep.subr.mxu0 0.0
        %883 = vmatpush1.msra.mxu0 0.0
        %884 = vmatprep.subr.mxu0 0.0
        %885 = vmatpush1.msra.mxu0 0.0
        %886 = vmatprep.subr.mxu0 0.0
        %887 = vmatpush1.msra.mxu0 0.0
        %888 = vmatprep.subr.mxu0 0.0
        %889 = vmatpush1.msra.mxu0 0.0
        %890 = vmatprep.subr.mxu0 0.0
        %891 = vmatpush1.msra.mxu0 0.0
        %892 = vmatprep.subr.mxu0 0.0
        %893 = vmatpush1.msra.mxu0 0.0
        %894 = vmatprep.subr.mxu0 0.0
        %895 = vmatpush1.msra.mxu0 0.0
        %896 = vmatprep.subr.mxu0 0.0
        %897 = vmatpush1.msra.mxu0 0.0
        %898 = vmatprep.subr.mxu0 0.0
        %899 = vmatpush1.msra.mxu0 0.0
        %900 = vmatprep.subr.mxu0 0.0
        %901 = vmatpush1.msra.mxu0 0.0
        %902 = vmatprep.subr.mxu0 0.0
        %903 = vmatpush1.msra.mxu0 0.0
        %904 = vmatprep.subr.mxu0 0.0
        %905 = vmatpush1.msra.mxu0 0.0
        %906 = vmatprep.subr.mxu0 0.0
        %907 = vmatpush1.msra.mxu0 0.0
        %908 = vmatprep.subr.mxu0 0.0
        %909 = vmatpush1.msra.mxu0 0.0
        %910 = vmatprep.subr.mxu0 0.0
        %911 = vmatpush1.msra.mxu0 0.0
        %912 = vmatprep.subr.mxu0 0.0
        %913 = vmatpush1.msra.mxu0 0.0
        %914 = vmatprep.subr.mxu0 0.0
        %915 = vmatpush1.msra.mxu0 0.0
        %916 = vmatprep.subr.mxu0 0.0
        %917 = vmatpush1.msra.mxu0 0.0
        %918 = vmatprep.subr.mxu0 0.0
        %919 = vmatpush1.msra.mxu0 0.0
        %920 = vmatprep.subr.mxu0 0.0
        %921 = vmatpush1.msra.mxu0 0.0
        %922 = vmatprep.subr.mxu0 0.0
        %923 = vmatpush1.msra.mxu0 0.0
        %924 = vmatprep.mubr.f32.mxu0 0.0
        %925 = vmatmul.mubr.f32.gmra.mrb[0].mxu0 %v858
        %v926 = vpop.f32.mrb[0].mxu0
        %v927 = vadd.f32 0.0, %v926
        %v928 = vpop.f32.mrb[0].mxu0
        %929 = vdwg.mxu0
        %v931 = vsel %vm526, %v686, 0
        %933 = vmatprep.subr.mxu0 0.0
        %934 = vmatpush1.msra.mxu0 %v689
        %935 = vmatprep.subr.mxu0 0.0
        %936 = vmatpush1.msra.mxu0 0.0
        %937 = vmatprep.subr.mxu0 0.0
        %938 = vmatpush1.msra.mxu0 0.0
        %939 = vmatprep.subr.mxu0 0.0
        %940 = vmatpush1.msra.mxu0 0.0
        %941 = vmatprep.subr.mxu0 0.0
        %942 = vmatpush1.msra.mxu0 0.0
        %943 = vmatprep.subr.mxu0 0.0
        %944 = vmatpush1.msra.mxu0 0.0
        %945 = vmatprep.subr.mxu0 0.0
        %946 = vmatpush1.msra.mxu0 0.0
        %947 = vmatprep.subr.mxu0 0.0
        %948 = vmatpush1.msra.mxu0 0.0
        %949 = vmatprep.subr.mxu0 0.0
        %950 = vmatpush1.msra.mxu0 0.0
        %951 = vmatprep.subr.mxu0 0.0
        %952 = vmatpush1.msra.mxu0 0.0
        %953 = vmatprep.subr.mxu0 0.0
        %954 = vmatpush1.msra.mxu0 0.0
        %955 = vmatprep.subr.mxu0 0.0
        %956 = vmatpush1.msra.mxu0 0.0
        %957 = vmatprep.subr.mxu0 0.0
        %958 = vmatpush1.msra.mxu0 0.0
        %959 = vmatprep.subr.mxu0 0.0
        %960 = vmatpush1.msra.mxu0 0.0
        %961 = vmatprep.subr.mxu0 0.0
        %962 = vmatpush1.msra.mxu0 0.0
        %963 = vmatprep.subr.mxu0 0.0
        %964 = vmatpush1.msra.mxu0 0.0
        %965 = vmatprep.subr.mxu0 0.0
        %966 = vmatpush1.msra.mxu0 0.0
        %967 = vmatprep.subr.mxu0 0.0
        %968 = vmatpush1.msra.mxu0 0.0
        %969 = vmatprep.subr.mxu0 0.0
        %970 = vmatpush1.msra.mxu0 0.0
        %971 = vmatprep.subr.mxu0 0.0
        %972 = vmatpush1.msra.mxu0 0.0
        %973 = vmatprep.subr.mxu0 0.0
        %974 = vmatpush1.msra.mxu0 0.0
        %975 = vmatprep.subr.mxu0 0.0
        %976 = vmatpush1.msra.mxu0 0.0
        %977 = vmatprep.subr.mxu0 0.0
        %978 = vmatpush1.msra.mxu0 0.0
        %979 = vmatprep.subr.mxu0 0.0
        %980 = vmatpush1.msra.mxu0 0.0
        %981 = vmatprep.subr.mxu0 0.0
        %982 = vmatpush1.msra.mxu0 0.0
        %983 = vmatprep.subr.mxu0 0.0
        %984 = vmatpush1.msra.mxu0 0.0
        %985 = vmatprep.subr.mxu0 0.0
        %986 = vmatpush1.msra.mxu0 0.0
        %987 = vmatprep.subr.mxu0 0.0
        %988 = vmatpush1.msra.mxu0 0.0
        %989 = vmatprep.subr.mxu0 0.0
        %990 = vmatpush1.msra.mxu0 0.0
        %991 = vmatprep.subr.mxu0 0.0
        %992 = vmatpush1.msra.mxu0 0.0
        %993 = vmatprep.subr.mxu0 0.0
        %994 = vmatpush1.msra.mxu0 0.0
        %995 = vmatprep.subr.mxu0 0.0
        %996 = vmatpush1.msra.mxu0 0.0
        %997 = vmatprep.mubr.f32.mxu0 0.0
        %998 = vmatmul.mubr.f32.gmra.mrb[0].mxu0 %v931
        %v999 = vpop.f32.mrb[0].mxu0
        %v1000 = vadd.f32 %v927, %v999
        %v1001 = vpop.f32.mrb[0].mxu0
        %1002 = vdwg.mxu0
        %1003 = vrot.lane.b32.xlu0 %v515, 112
        %v1004 = vpop.permute.xlu0 %1003
        %1005 = vrot.lane.b32.xlu0 %v515, 80
        %v1006 = vpop.permute.xlu0 %1005
        %v1007 = vsel %vm526, %v1004, 0
        %v1009 = vsel %vm526, %v1006, 0
        %1011 = vmatprep.subr.mxu0 0.0
        %1012 = vmatpush1.xpose.msra.mxu0 %v1009
        %1013 = vmatprep.subr.mxu0 0.0
        %1014 = vmatpush1.xpose.msra.mxu0 0.0
        %1015 = vmatprep.subr.mxu0 0.0
        %1016 = vmatpush1.xpose.msra.mxu0 0.0
        %1017 = vmatprep.subr.mxu0 0.0
        %1018 = vmatpush1.xpose.msra.mxu0 0.0
        %1019 = vmatprep.subr.mxu0 0.0
        %1020 = vmatpush1.xpose.msra.mxu0 0.0
        %1021 = vmatprep.subr.mxu0 0.0
        %1022 = vmatpush1.xpose.msra.mxu0 0.0
        %1023 = vmatprep.subr.mxu0 0.0
        %1024 = vmatpush1.xpose.msra.mxu0 0.0
        %1025 = vmatprep.subr.mxu0 0.0
        %1026 = vmatpush1.xpose.msra.mxu0 0.0
        %1027 = vmatprep.subr.mxu0 0.0
        %1028 = vmatpush1.xpose.msra.mxu0 0.0
        %1029 = vmatprep.subr.mxu0 0.0
        %1030 = vmatpush1.xpose.msra.mxu0 0.0
        %1031 = vmatprep.subr.mxu0 0.0
        %1032 = vmatpush1.xpose.msra.mxu0 0.0
        %1033 = vmatprep.subr.mxu0 0.0
        %1034 = vmatpush1.xpose.msra.mxu0 0.0
        %1035 = vmatprep.subr.mxu0 0.0
        %1036 = vmatpush1.xpose.msra.mxu0 0.0
        %1037 = vmatprep.subr.mxu0 0.0
        %1038 = vmatpush1.xpose.msra.mxu0 0.0
        %1039 = vmatprep.subr.mxu0 0.0
        %1040 = vmatpush1.xpose.msra.mxu0 0.0
        %1041 = vmatprep.subr.mxu0 0.0
        %1042 = vmatpush1.xpose.msra.mxu0 0.0
        %1043 = vmatprep.subr.mxu0 0.0
        %1044 = vmatpush1.xpose.msra.mxu0 0.0
        %1045 = vmatprep.subr.mxu0 0.0
        %1046 = vmatpush1.xpose.msra.mxu0 0.0
        %1047 = vmatprep.subr.mxu0 0.0
        %1048 = vmatpush1.xpose.msra.mxu0 0.0
        %1049 = vmatprep.subr.mxu0 0.0
        %1050 = vmatpush1.xpose.msra.mxu0 0.0
        %1051 = vmatprep.subr.mxu0 0.0
        %1052 = vmatpush1.xpose.msra.mxu0 0.0
        %1053 = vmatprep.subr.mxu0 0.0
        %1054 = vmatpush1.xpose.msra.mxu0 0.0
        %1055 = vmatprep.subr.mxu0 0.0
        %1056 = vmatpush1.xpose.msra.mxu0 0.0
        %1057 = vmatprep.subr.mxu0 0.0
        %1058 = vmatpush1.xpose.msra.mxu0 0.0
        %1059 = vmatprep.subr.mxu0 0.0
        %1060 = vmatpush1.xpose.msra.mxu0 0.0
        %1061 = vmatprep.subr.mxu0 0.0
        %1062 = vmatpush1.xpose.msra.mxu0 0.0
        %1063 = vmatprep.subr.mxu0 0.0
        %1064 = vmatpush1.xpose.msra.mxu0 0.0
        %1065 = vmatprep.subr.mxu0 0.0
        %1066 = vmatpush1.xpose.msra.mxu0 0.0
        %1067 = vmatprep.subr.mxu0 0.0
        %1068 = vmatpush1.xpose.msra.mxu0 0.0
        %1069 = vmatprep.subr.mxu0 0.0
        %1070 = vmatpush1.xpose.msra.mxu0 0.0
        %1071 = vmatprep.subr.mxu0 0.0
        %1072 = vmatpush1.xpose.msra.mxu0 0.0
        %1073 = vmatprep.subr.mxu0 0.0
        %1074 = vmatpush1.xpose.msra.mxu0 0.0
        %1075 = vmatprep.mubr.f32.mxu0 0.0
        %1076 = vmatmul.mubr.f32.gmra.mrb[0].mxu0 %v1007
        %v1077 = vpop.f32.mrb[0].mxu0
        %v1078 = vadd.f32 0.0, %v1077
        %v1079 = vpop.f32.mrb[0].mxu0
        %1080 = vdwg.mxu0
        %v1081 = vsel %vm522, %v1078, -1e+30
        %v1082 = vsel %vm526, %v1081, -inf
        %1083 = vmax.xlane.f32.xlu0 %v1082
        %v1084 = vpop.xlane.xlu0 %1083
        %v1085 = vsub.f32 %v1081, %v1084
        %v1086 = vmul.f32 %v1085, 1.442695
        %v1087 = vpow.pop %v1086
        %v1088 = vsel %vm526, %v1087, 0.0
        %1089 = vadd.xlane.f32.xlu0 %v1088
        %v1090 = vpop.xlane.xlu0 %1089
        %v1091 = vrcp.pop %v1090
        %v1092 = vmul.f32 %v1087, %v1091
        %1093 = vrot.lane.b32.xlu0 %v515, 48
        %v1094 = vpop.permute.xlu0 %1093
        %v1097 = vsel %vm526, %v1092, 0
        %1099 = vmatprep.subr.mxu0 0.0
        %1100 = vmatpush1.msra.mxu0 %v1094
        %1101 = vmatprep.subr.mxu0 0.0
        %1102 = vmatpush1.msra.mxu0 0.0
        %1103 = vmatprep.subr.mxu0 0.0
        %1104 = vmatpush1.msra.mxu0 0.0
        %1105 = vmatprep.subr.mxu0 0.0
        %1106 = vmatpush1.msra.mxu0 0.0
        %1107 = vmatprep.subr.mxu0 0.0
        %1108 = vmatpush1.msra.mxu0 0.0
        %1109 = vmatprep.subr.mxu0 0.0
        %1110 = vmatpush1.msra.mxu0 0.0
        %1111 = vmatprep.subr.mxu0 0.0
        %1112 = vmatpush1.msra.mxu0 0.0
        %1113 = vmatprep.subr.mxu0 0.0
        %1114 = vmatpush1.msra.mxu0 0.0
        %1115 = vmatprep.subr.mxu0 0.0
        %1116 = vmatpush1.msra.mxu0 0.0
        %1117 = vmatprep.subr.mxu0 0.0
        %1118 = vmatpush1.msra.mxu0 0.0
        %1119 = vmatprep.subr.mxu0 0.0
        %1120 = vmatpush1.msra.mxu0 0.0
        %1121 = vmatprep.subr.mxu0 0.0
        %1122 = vmatpush1.msra.mxu0 0.0
        %1123 = vmatprep.subr.mxu0 0.0
        %1124 = vmatpush1.msra.mxu0 0.0
        %1125 = vmatprep.subr.mxu0 0.0
        %1126 = vmatpush1.msra.mxu0 0.0
        %1127 = vmatprep.subr.mxu0 0.0
        %1128 = vmatpush1.msra.mxu0 0.0
        %1129 = vmatprep.subr.mxu0 0.0
        %1130 = vmatpush1.msra.mxu0 0.0
        %1131 = vmatprep.subr.mxu0 0.0
        %1132 = vmatpush1.msra.mxu0 0.0
        %1133 = vmatprep.subr.mxu0 0.0
        %1134 = vmatpush1.msra.mxu0 0.0
        %1135 = vmatprep.subr.mxu0 0.0
        %1136 = vmatpush1.msra.mxu0 0.0
        %1137 = vmatprep.subr.mxu0 0.0
        %1138 = vmatpush1.msra.mxu0 0.0
        %1139 = vmatprep.subr.mxu0 0.0
        %1140 = vmatpush1.msra.mxu0 0.0
        %1141 = vmatprep.subr.mxu0 0.0
        %1142 = vmatpush1.msra.mxu0 0.0
        %1143 = vmatprep.subr.mxu0 0.0
        %1144 = vmatpush1.msra.mxu0 0.0
        %1145 = vmatprep.subr.mxu0 0.0
        %1146 = vmatpush1.msra.mxu0 0.0
        %1147 = vmatprep.subr.mxu0 0.0
        %1148 = vmatpush1.msra.mxu0 0.0
        %1149 = vmatprep.subr.mxu0 0.0
        %1150 = vmatpush1.msra.mxu0 0.0
        %1151 = vmatprep.subr.mxu0 0.0
        %1152 = vmatpush1.msra.mxu0 0.0
        %1153 = vmatprep.subr.mxu0 0.0
        %1154 = vmatpush1.msra.mxu0 0.0
        %1155 = vmatprep.subr.mxu0 0.0
        %1156 = vmatpush1.msra.mxu0 0.0
        %1157 = vmatprep.subr.mxu0 0.0
        %1158 = vmatpush1.msra.mxu0 0.0
        %1159 = vmatprep.subr.mxu0 0.0
        %1160 = vmatpush1.msra.mxu0 0.0
        %1161 = vmatprep.subr.mxu0 0.0
        %1162 = vmatpush1.msra.mxu0 0.0
        %1163 = vmatprep.mubr.f32.mxu0 0.0
        %1164 = vmatmul.mubr.f32.gmra.mrb[0].mxu0 %v1097
        %v1165 = vpop.f32.mrb[0].mxu0
        %v1166 = vadd.f32 0.0, %v1165
        %v1167 = vpop.f32.mrb[0].mxu0
        %1168 = vdwg.mxu0
        %v1169 = vld [vmem:[%s2 + $0x10] sm:$0xff]
        %v1171 = vsel %vm526, %v1166, 0
        %1173 = vmatprep.subr.mxu0 0.0
        %1174 = vmatpush1.msra.mxu0 %v1169
        %1175 = vmatprep.subr.mxu0 0.0
        %1176 = vmatpush1.msra.mxu0 0.0
        %1177 = vmatprep.subr.mxu0 0.0
        %1178 = vmatpush1.msra.mxu0 0.0
        %1179 = vmatprep.subr.mxu0 0.0
        %1180 = vmatpush1.msra.mxu0 0.0
        %1181 = vmatprep.subr.mxu0 0.0
        %1182 = vmatpush1.msra.mxu0 0.0
        %1183 = vmatprep.subr.mxu0 0.0
        %1184 = vmatpush1.msra.mxu0 0.0
        %1185 = vmatprep.subr.mxu0 0.0
        %1186 = vmatpush1.msra.mxu0 0.0
        %1187 = vmatprep.subr.mxu0 0.0
        %1188 = vmatpush1.msra.mxu0 0.0
        %1189 = vmatprep.subr.mxu0 0.0
        %1190 = vmatpush1.msra.mxu0 0.0
        %1191 = vmatprep.subr.mxu0 0.0
        %1192 = vmatpush1.msra.mxu0 0.0
        %1193 = vmatprep.subr.mxu0 0.0
        %1194 = vmatpush1.msra.mxu0 0.0
        %1195 = vmatprep.subr.mxu0 0.0
        %1196 = vmatpush1.msra.mxu0 0.0
        %1197 = vmatprep.subr.mxu0 0.0
        %1198 = vmatpush1.msra.mxu0 0.0
        %1199 = vmatprep.subr.mxu0 0.0
        %1200 = vmatpush1.msra.mxu0 0.0
        %1201 = vmatprep.subr.mxu0 0.0
        %1202 = vmatpush1.msra.mxu0 0.0
        %1203 = vmatprep.subr.mxu0 0.0
        %1204 = vmatpush1.msra.mxu0 0.0
        %1205 = vmatprep.subr.mxu0 0.0
        %1206 = vmatpush1.msra.mxu0 0.0
        %1207 = vmatprep.subr.mxu0 0.0
        %1208 = vmatpush1.msra.mxu0 0.0
        %1209 = vmatprep.subr.mxu0 0.0
        %1210 = vmatpush1.msra.mxu0 0.0
        %1211 = vmatprep.subr.mxu0 0.0
        %1212 = vmatpush1.msra.mxu0 0.0
        %1213 = vmatprep.subr.mxu0 0.0
        %1214 = vmatpush1.msra.mxu0 0.0
        %1215 = vmatprep.subr.mxu0 0.0
        %1216 = vmatpush1.msra.mxu0 0.0
        %1217 = vmatprep.subr.mxu0 0.0
        %1218 = vmatpush1.msra.mxu0 0.0
        %1219 = vmatprep.subr.mxu0 0.0
        %1220 = vmatpush1.msra.mxu0 0.0
        %1221 = vmatprep.subr.mxu0 0.0
        %1222 = vmatpush1.msra.mxu0 0.0
        %1223 = vmatprep.subr.mxu0 0.0
        %1224 = vmatpush1.msra.mxu0 0.0
        %1225 = vmatprep.subr.mxu0 0.0
        %1226 = vmatpush1.msra.mxu0 0.0
        %1227 = vmatprep.subr.mxu0 0.0
        %1228 = vmatpush1.msra.mxu0 0.0
        %1229 = vmatprep.subr.mxu0 0.0
        %1230 = vmatpush1.msra.mxu0 0.0
        %1231 = vmatprep.subr.mxu0 0.0
        %1232 = vmatpush1.msra.mxu0 0.0
        %1233 = vmatprep.subr.mxu0 0.0
        %1234 = vmatpush1.msra.mxu0 0.0
        %1235 = vmatprep.subr.mxu0 0.0
        %1236 = vmatpush1.msra.mxu0 0.0
        %1237 = vmatprep.mubr.f32.mxu0 0.0
        %1238 = vmatmul.mubr.f32.gmra.mrb[0].mxu0 %v1171
        %v1239 = vpop.f32.mrb[0].mxu0
        %v1240 = vadd.f32 0.0, %v1239
        %v1241 = vpop.f32.mrb[0].mxu0
        %1242 = vdwg.mxu0
        %v1243 = vadd.f32 %v1000, %v1240
        %1244 = vrot.lane.b32.xlu0 %v515, 104
        %v1245 = vpop.permute.xlu0 %1244
        %1246 = vrot.lane.b32.xlu0 %v515, 72
        %v1247 = vpop.permute.xlu0 %1246
        %v1248 = vsel %vm526, %v1245, 0
        %v1250 = vsel %vm526, %v1247, 0
        %1252 = vmatprep.subr.mxu0 0.0
        %1253 = vmatpush1.xpose.msra.mxu0 %v1250
        %1254 = vmatprep.subr.mxu0 0.0
        %1255 = vmatpush1.xpose.msra.mxu0 0.0
        %1256 = vmatprep.subr.mxu0 0.0
        %1257 = vmatpush1.xpose.msra.mxu0 0.0
        %1258 = vmatprep.subr.mxu0 0.0
        %1259 = vmatpush1.xpose.msra.mxu0 0.0
        %1260 = vmatprep.subr.mxu0 0.0
        %1261 = vmatpush1.xpose.msra.mxu0 0.0
        %1262 = vmatprep.subr.mxu0 0.0
        %1263 = vmatpush1.xpose.msra.mxu0 0.0
        %1264 = vmatprep.subr.mxu0 0.0
        %1265 = vmatpush1.xpose.msra.mxu0 0.0
        %1266 = vmatprep.subr.mxu0 0.0
        %1267 = vmatpush1.xpose.msra.mxu0 0.0
        %1268 = vmatprep.subr.mxu0 0.0
        %1269 = vmatpush1.xpose.msra.mxu0 0.0
        %1270 = vmatprep.subr.mxu0 0.0
        %1271 = vmatpush1.xpose.msra.mxu0 0.0
        %1272 = vmatprep.subr.mxu0 0.0
        %1273 = vmatpush1.xpose.msra.mxu0 0.0
        %1274 = vmatprep.subr.mxu0 0.0
        %1275 = vmatpush1.xpose.msra.mxu0 0.0
        %1276 = vmatprep.subr.mxu0 0.0
        %1277 = vmatpush1.xpose.msra.mxu0 0.0
        %1278 = vmatprep.subr.mxu0 0.0
        %1279 = vmatpush1.xpose.msra.mxu0 0.0
        %1280 = vmatprep.subr.mxu0 0.0
        %1281 = vmatpush1.xpose.msra.mxu0 0.0
        %1282 = vmatprep.subr.mxu0 0.0
        %1283 = vmatpush1.xpose.msra.mxu0 0.0
        %1284 = vmatprep.subr.mxu0 0.0
        %1285 = vmatpush1.xpose.msra.mxu0 0.0
        %1286 = vmatprep.subr.mxu0 0.0
        %1287 = vmatpush1.xpose.msra.mxu0 0.0
        %1288 = vmatprep.subr.mxu0 0.0
        %1289 = vmatpush1.xpose.msra.mxu0 0.0
        %1290 = vmatprep.subr.mxu0 0.0
        %1291 = vmatpush1.xpose.msra.mxu0 0.0
        %1292 = vmatprep.subr.mxu0 0.0
        %1293 = vmatpush1.xpose.msra.mxu0 0.0
        %1294 = vmatprep.subr.mxu0 0.0
        %1295 = vmatpush1.xpose.msra.mxu0 0.0
        %1296 = vmatprep.subr.mxu0 0.0
        %1297 = vmatpush1.xpose.msra.mxu0 0.0
        %1298 = vmatprep.subr.mxu0 0.0
        %1299 = vmatpush1.xpose.msra.mxu0 0.0
        %1300 = vmatprep.subr.mxu0 0.0
        %1301 = vmatpush1.xpose.msra.mxu0 0.0
        %1302 = vmatprep.subr.mxu0 0.0
        %1303 = vmatpush1.xpose.msra.mxu0 0.0
        %1304 = vmatprep.subr.mxu0 0.0
        %1305 = vmatpush1.xpose.msra.mxu0 0.0
        %1306 = vmatprep.subr.mxu0 0.0
        %1307 = vmatpush1.xpose.msra.mxu0 0.0
        %1308 = vmatprep.subr.mxu0 0.0
        %1309 = vmatpush1.xpose.msra.mxu0 0.0
        %1310 = vmatprep.subr.mxu0 0.0
        %1311 = vmatpush1.xpose.msra.mxu0 0.0
        %1312 = vmatprep.subr.mxu0 0.0
        %1313 = vmatpush1.xpose.msra.mxu0 0.0
        %1314 = vmatprep.subr.mxu0 0.0
        %1315 = vmatpush1.xpose.msra.mxu0 0.0
        %1316 = vmatprep.mubr.f32.mxu0 0.0
        %1317 = vmatmul.mubr.f32.gmra.mrb[0].mxu0 %v1248
        %v1318 = vpop.f32.mrb[0].mxu0
        %v1319 = vadd.f32 0.0, %v1318
        %v1320 = vpop.f32.mrb[0].mxu0
        %1321 = vdwg.mxu0
        %v1322 = vsel %vm522, %v1319, -1e+30
        %v1323 = vsel %vm526, %v1322, -inf
        %1324 = vmax.xlane.f32.xlu0 %v1323
        %v1325 = vpop.xlane.xlu0 %1324
        %v1326 = vsub.f32 %v1322, %v1325
        %v1327 = vmul.f32 %v1326, 1.442695
        %v1328 = vpow.pop %v1327
        %v1329 = vsel %vm526, %v1328, 0.0
        %1330 = vadd.xlane.f32.xlu0 %v1329
        %v1331 = vpop.xlane.xlu0 %1330
        %v1332 = vrcp.pop %v1331
        %v1333 = vmul.f32 %v1328, %v1332
        %1334 = vrot.lane.b32.xlu0 %v515, 40
        %v1335 = vpop.permute.xlu0 %1334
        %v1338 = vsel %vm526, %v1333, 0
        %1340 = vmatprep.subr.mxu0 0.0
        %1341 = vmatpush1.msra.mxu0 %v1335
        %1342 = vmatprep.subr.mxu0 0.0
        %1343 = vmatpush1.msra.mxu0 0.0
        %1344 = vmatprep.subr.mxu0 0.0
        %1345 = vmatpush1.msra.mxu0 0.0
        %1346 = vmatprep.subr.mxu0 0.0
        %1347 = vmatpush1.msra.mxu0 0.0
        %1348 = vmatprep.subr.mxu0 0.0
        %1349 = vmatpush1.msra.mxu0 0.0
        %1350 = vmatprep.subr.mxu0 0.0
        %1351 = vmatpush1.msra.mxu0 0.0
        %1352 = vmatprep.subr.mxu0 0.0
        %1353 = vmatpush1.msra.mxu0 0.0
        %1354 = vmatprep.subr.mxu0 0.0
        %1355 = vmatpush1.msra.mxu0 0.0
        %1356 = vmatprep.subr.mxu0 0.0
        %1357 = vmatpush1.msra.mxu0 0.0
        %1358 = vmatprep.subr.mxu0 0.0
        %1359 = vmatpush1.msra.mxu0 0.0
        %1360 = vmatprep.subr.mxu0 0.0
        %1361 = vmatpush1.msra.mxu0 0.0
        %1362 = vmatprep.subr.mxu0 0.0
        %1363 = vmatpush1.msra.mxu0 0.0
        %1364 = vmatprep.subr.mxu0 0.0
        %1365 = vmatpush1.msra.mxu0 0.0
        %1366 = vmatprep.subr.mxu0 0.0
        %1367 = vmatpush1.msra.mxu0 0.0
        %1368 = vmatprep.subr.mxu0 0.0
        %1369 = vmatpush1.msra.mxu0 0.0
        %1370 = vmatprep.subr.mxu0 0.0
        %1371 = vmatpush1.msra.mxu0 0.0
        %1372 = vmatprep.subr.mxu0 0.0
        %1373 = vmatpush1.msra.mxu0 0.0
        %1374 = vmatprep.subr.mxu0 0.0
        %1375 = vmatpush1.msra.mxu0 0.0
        %1376 = vmatprep.subr.mxu0 0.0
        %1377 = vmatpush1.msra.mxu0 0.0
        %1378 = vmatprep.subr.mxu0 0.0
        %1379 = vmatpush1.msra.mxu0 0.0
        %1380 = vmatprep.subr.mxu0 0.0
        %1381 = vmatpush1.msra.mxu0 0.0
        %1382 = vmatprep.subr.mxu0 0.0
        %1383 = vmatpush1.msra.mxu0 0.0
        %1384 = vmatprep.subr.mxu0 0.0
        %1385 = vmatpush1.msra.mxu0 0.0
        %1386 = vmatprep.subr.mxu0 0.0
        %1387 = vmatpush1.msra.mxu0 0.0
        %1388 = vmatprep.subr.mxu0 0.0
        %1389 = vmatpush1.msra.mxu0 0.0
        %1390 = vmatprep.subr.mxu0 0.0
        %1391 = vmatpush1.msra.mxu0 0.0
        %1392 = vmatprep.subr.mxu0 0.0
        %1393 = vmatpush1.msra.mxu0 0.0
        %1394 = vmatprep.subr.mxu0 0.0
        %1395 = vmatpush1.msra.mxu0 0.0
        %1396 = vmatprep.subr.mxu0 0.0
        %1397 = vmatpush1.msra.mxu0 0.0
        %1398 = vmatprep.subr.mxu0 0.0
        %1399 = vmatpush1.msra.mxu0 0.0
        %1400 = vmatprep.subr.mxu0 0.0
        %1401 = vmatpush1.msra.mxu0 0.0
        %1402 = vmatprep.subr.mxu0 0.0
        %1403 = vmatpush1.msra.mxu0 0.0
        %1404 = vmatprep.mubr.f32.mxu0 0.0
        %1405 = vmatmul.mubr.f32.gmra.mrb[0].mxu0 %v1338
        %v1406 = vpop.f32.mrb[0].mxu0
        %v1407 = vadd.f32 0.0, %v1406
        %v1408 = vpop.f32.mrb[0].mxu0
        %1409 = vdwg.mxu0
        %v1410 = vld [vmem:[%s2 + $0x18] sm:$0xff]
        %v1412 = vsel %vm526, %v1407, 0
        %1414 = vmatprep.subr.mxu0 0.0
        %1415 = vmatpush1.msra.mxu0 %v1410
        %1416 = vmatprep.subr.mxu0 0.0
        %1417 = vmatpush1.msra.mxu0 0.0
        %1418 = vmatprep.subr.mxu0 0.0
        %1419 = vmatpush1.msra.mxu0 0.0
        %1420 = vmatprep.subr.mxu0 0.0
        %1421 = vmatpush1.msra.mxu0 0.0
        %1422 = vmatprep.subr.mxu0 0.0
        %1423 = vmatpush1.msra.mxu0 0.0
        %1424 = vmatprep.subr.mxu0 0.0
        %1425 = vmatpush1.msra.mxu0 0.0
        %1426 = vmatprep.subr.mxu0 0.0
        %1427 = vmatpush1.msra.mxu0 0.0
        %1428 = vmatprep.subr.mxu0 0.0
        %1429 = vmatpush1.msra.mxu0 0.0
        %1430 = vmatprep.subr.mxu0 0.0
        %1431 = vmatpush1.msra.mxu0 0.0
        %1432 = vmatprep.subr.mxu0 0.0
        %1433 = vmatpush1.msra.mxu0 0.0
        %1434 = vmatprep.subr.mxu0 0.0
        %1435 = vmatpush1.msra.mxu0 0.0
        %1436 = vmatprep.subr.mxu0 0.0
        %1437 = vmatpush1.msra.mxu0 0.0
        %1438 = vmatprep.subr.mxu0 0.0
        %1439 = vmatpush1.msra.mxu0 0.0
        %1440 = vmatprep.subr.mxu0 0.0
        %1441 = vmatpush1.msra.mxu0 0.0
        %1442 = vmatprep.subr.mxu0 0.0
        %1443 = vmatpush1.msra.mxu0 0.0
        %1444 = vmatprep.subr.mxu0 0.0
        %1445 = vmatpush1.msra.mxu0 0.0
        %1446 = vmatprep.subr.mxu0 0.0
        %1447 = vmatpush1.msra.mxu0 0.0
        %1448 = vmatprep.subr.mxu0 0.0
        %1449 = vmatpush1.msra.mxu0 0.0
        %1450 = vmatprep.subr.mxu0 0.0
        %1451 = vmatpush1.msra.mxu0 0.0
        %1452 = vmatprep.subr.mxu0 0.0
        %1453 = vmatpush1.msra.mxu0 0.0
        %1454 = vmatprep.subr.mxu0 0.0
        %1455 = vmatpush1.msra.mxu0 0.0
        %1456 = vmatprep.subr.mxu0 0.0
        %1457 = vmatpush1.msra.mxu0 0.0
        %1458 = vmatprep.subr.mxu0 0.0
        %1459 = vmatpush1.msra.mxu0 0.0
        %1460 = vmatprep.subr.mxu0 0.0
        %1461 = vmatpush1.msra.mxu0 0.0
        %1462 = vmatprep.subr.mxu0 0.0
        %1463 = vmatpush1.msra.mxu0 0.0
        %1464 = vmatprep.subr.mxu0 0.0
        %1465 = vmatpush1.msra.mxu0 0.0
        %1466 = vmatprep.subr.mxu0 0.0
        %1467 = vmatpush1.msra.mxu0 0.0
        %1468 = vmatprep.subr.mxu0 0.0
        %1469 = vmatpush1.msra.mxu0 0.0
        %1470 = vmatprep.subr.mxu0 0.0
        %1471 = vmatpush1.msra.mxu0 0.0
        %1472 = vmatprep.subr.mxu0 0.0
        %1473 = vmatpush1.msra.mxu0 0.0
        %1474 = vmatprep.subr.mxu0 0.0
        %1475 = vmatpush1.msra.mxu0 0.0
        %1476 = vmatprep.subr.mxu0 0.0
        %1477 = vmatpush1.msra.mxu0 0.0
        %1478 = vmatprep.mubr.f32.mxu0 0.0
        %1479 = vmatmul.mubr.f32.gmra.mrb[0].mxu0 %v1412
        %v1480 = vpop.f32.mrb[0].mxu0
        %v1481 = vadd.f32 0.0, %v1480
        %v1482 = vpop.f32.mrb[0].mxu0
        %1483 = vdwg.mxu0
        %v1484 = vadd.f32 %v1243, %v1481
        %v1485 = vld [vmem:[%s3] sm:$0x1]
        %v1487 = vlaneseq
        %v1488 = vshrl.u32 %v1487, 7
        %v1489 = vsub.s32 0, %v1488
        %v1490 = vrot.slane %v1485, %v1489
        %v1492 = vadd.f32 %v1484, %v1490
        %v1493 = vadd.f32 %v409, %v1492
        %v1494 = vld [vmem:[%s6] sm:$0x1]
        %v1495 = vld [vmem:[%s7] sm:$0x1]
        %v1496 = vsel %vm412, %v1493, 0.0
        %1497 = vadd.xlane.f32.xlu0 %v1496
        %v1498 = vpop.xlane.xlu0 %1497
        %v1499 = vmul.f32 %v1498, %v416
        %v1500 = vsub.f32 %v1493, %v1499
        %v1501 = vmul.f32 %v1500, %v1500
        %v1502 = vsel %vm412, %v1501, 0.0
        %1503 = vadd.xlane.f32.xlu0 %v1502
        %v1504 = vpop.xlane.xlu0 %1503
        %v1505 = vmul.f32 %v1504, %v416
        %v1506 = vadd.f32 %v1505, 1e-05
        %v1507 = vrsqrt.pop %v1506
        %v1508 = vmul.f32 %v1500, %v1507
        %v1510 = vlaneseq
        %v1511 = vshrl.u32 %v1510, 7
        %v1512 = vsub.s32 0, %v1511
        %v1513 = vrot.slane %v1494, %v1512
        %v1515 = vmul.f32 %v1508, %v1513
        %v1517 = vlaneseq
        %v1518 = vshrl.u32 %v1517, 7
        %v1519 = vsub.s32 0, %v1518
        %v1520 = vrot.slane %v1495, %v1519
        %v1522 = vadd.f32 %v1515, %v1520
        %v1523 = vld [vmem:[%s8] sm:$0xff]
        %v1524 = vld [vmem:[%s8 + $0x8] sm:$0xff]
        %v1525 = vld [vmem:[%s8 + $0x10] sm:$0xff]
        %v1526 = vld [vmem:[%s8 + $0x18] sm:$0xff]
        %v1527 = vld [vmem:[%s9] sm:$0x1]
        %v1529 = vlaneseq
        %v1530 = vshrl.u32 %v1529, 7
        %v1531 = vsub.s32 0, %v1530
        %v1532 = vrot.slane %v1527, %v1531
        %v1535 = vsel %vm412, %v1522, 0
        %1537 = vmatprep.subr.mxu0 0.0
        %1538 = vmatpush1.msra.mxu0 %v1523
        %1539 = vmatprep.subr.mxu0 0.0
        %1540 = vmatpush1.msra.mxu0 %v1524
        %1541 = vmatprep.subr.mxu0 0.0
        %1542 = vmatpush1.msra.mxu0 %v1525
        %1543 = vmatprep.subr.mxu0 0.0
        %1544 = vmatpush1.msra.mxu0 %v1526
        %1545 = vmatprep.subr.mxu0 0.0
        %1546 = vmatpush1.msra.mxu0 0.0
        %1547 = vmatprep.subr.mxu0 0.0
        %1548 = vmatpush1.msra.mxu0 0.0
        %1549 = vmatprep.subr.mxu0 0.0
        %1550 = vmatpush1.msra.mxu0 0.0
        %1551 = vmatprep.subr.mxu0 0.0
        %1552 = vmatpush1.msra.mxu0 0.0
        %1553 = vmatprep.subr.mxu0 0.0
        %1554 = vmatpush1.msra.mxu0 0.0
        %1555 = vmatprep.subr.mxu0 0.0
        %1556 = vmatpush1.msra.mxu0 0.0
        %1557 = vmatprep.subr.mxu0 0.0
        %1558 = vmatpush1.msra.mxu0 0.0
        %1559 = vmatprep.subr.mxu0 0.0
        %1560 = vmatpush1.msra.mxu0 0.0
        %1561 = vmatprep.subr.mxu0 0.0
        %1562 = vmatpush1.msra.mxu0 0.0
        %1563 = vmatprep.subr.mxu0 0.0
        %1564 = vmatpush1.msra.mxu0 0.0
        %1565 = vmatprep.subr.mxu0 0.0
        %1566 = vmatpush1.msra.mxu0 0.0
        %1567 = vmatprep.subr.mxu0 0.0
        %1568 = vmatpush1.msra.mxu0 0.0
        %1569 = vmatprep.subr.mxu0 0.0
        %1570 = vmatpush1.msra.mxu0 0.0
        %1571 = vmatprep.subr.mxu0 0.0
        %1572 = vmatpush1.msra.mxu0 0.0
        %1573 = vmatprep.subr.mxu0 0.0
        %1574 = vmatpush1.msra.mxu0 0.0
        %1575 = vmatprep.subr.mxu0 0.0
        %1576 = vmatpush1.msra.mxu0 0.0
        %1577 = vmatprep.subr.mxu0 0.0
        %1578 = vmatpush1.msra.mxu0 0.0
        %1579 = vmatprep.subr.mxu0 0.0
        %1580 = vmatpush1.msra.mxu0 0.0
        %1581 = vmatprep.subr.mxu0 0.0
        %1582 = vmatpush1.msra.mxu0 0.0
        %1583 = vmatprep.subr.mxu0 0.0
        %1584 = vmatpush1.msra.mxu0 0.0
        %1585 = vmatprep.subr.mxu0 0.0
        %1586 = vmatpush1.msra.mxu0 0.0
        %1587 = vmatprep.subr.mxu0 0.0
        %1588 = vmatpush1.msra.mxu0 0.0
        %1589 = vmatprep.subr.mxu0 0.0
        %1590 = vmatpush1.msra.mxu0 0.0
        %1591 = vmatprep.subr.mxu0 0.0
        %1592 = vmatpush1.msra.mxu0 0.0
        %1593 = vmatprep.subr.mxu0 0.0
        %1594 = vmatpush1.msra.mxu0 0.0
        %1595 = vmatprep.subr.mxu0 0.0
        %1596 = vmatpush1.msra.mxu0 0.0
        %1597 = vmatprep.subr.mxu0 0.0
        %1598 = vmatpush1.msra.mxu0 0.0
        %1599 = vmatprep.subr.mxu0 0.0
        %1600 = vmatpush1.msra.mxu0 0.0
        %1601 = vmatprep.mubr.f32.mxu0 0.0
        %1602 = vmatmul.mubr.f32.gmra.mrb[0].mxu0 %v1535
        %v1603 = vpop.f32.mrb[0].mxu0
        %v1604 = vadd.f32 %v1532, %v1603
        %v1605 = vpop.f32.mrb[0].mxu0
        %1606 = vdwg.mxu0
        %v1607 = vmax.f32 %v1604, 0.0
        %v1608 = vld [vmem:[%s10] sm:$0xff]
        %v1609 = vld [vmem:[%s10 + $0x8] sm:$0xff]
        %v1610 = vld [vmem:[%s10 + $0x10] sm:$0xff]
        %v1611 = vld [vmem:[%s10 + $0x18] sm:$0xff]
        %v1612 = vld [vmem:[%s10 + $0x20] sm:$0xff]
        %v1613 = vld [vmem:[%s10 + $0x28] sm:$0xff]
        %v1614 = vld [vmem:[%s10 + $0x30] sm:$0xff]
        %v1615 = vld [vmem:[%s10 + $0x38] sm:$0xff]
        %v1616 = vld [vmem:[%s10 + $0x40] sm:$0xff]
        %v1617 = vld [vmem:[%s10 + $0x48] sm:$0xff]
        %v1618 = vld [vmem:[%s10 + $0x50] sm:$0xff]
        %v1619 = vld [vmem:[%s10 + $0x58] sm:$0xff]
        %v1620 = vld [vmem:[%s10 + $0x60] sm:$0xff]
        %v1621 = vld [vmem:[%s10 + $0x68] sm:$0xff]
        %v1622 = vld [vmem:[%s10 + $0x70] sm:$0xff]
        %v1623 = vld [vmem:[%s10 + $0x78] sm:$0xff]
        %v1624 = vld [vmem:[%s11] sm:$0x1]
        %v1626 = vlaneseq
        %v1627 = vshrl.u32 %v1626, 7
        %v1628 = vsub.s32 0, %v1627
        %v1629 = vrot.slane %v1624, %v1628
        %1631 = vmatprep.subr.mxu0 0.0
        %1632 = vmatpush1.msra.mxu0 %v1608
        %1633 = vmatprep.subr.mxu0 0.0
        %1634 = vmatpush1.msra.mxu0 %v1609
        %1635 = vmatprep.subr.mxu0 0.0
        %1636 = vmatpush1.msra.mxu0 %v1610
        %1637 = vmatprep.subr.mxu0 0.0
        %1638 = vmatpush1.msra.mxu0 %v1611
        %1639 = vmatprep.subr.mxu0 0.0
        %1640 = vmatpush1.msra.mxu0 %v1612
        %1641 = vmatprep.subr.mxu0 0.0
        %1642 = vmatpush1.msra.mxu0 %v1613
        %1643 = vmatprep.subr.mxu0 0.0
        %1644 = vmatpush1.msra.mxu0 %v1614
        %1645 = vmatprep.subr.mxu0 0.0
        %1646 = vmatpush1.msra.mxu0 %v1615
        %1647 = vmatprep.subr.mxu0 0.0
        %1648 = vmatpush1.msra.mxu0 %v1616
        %1649 = vmatprep.subr.mxu0 0.0
        %1650 = vmatpush1.msra.mxu0 %v1617
        %1651 = vmatprep.subr.mxu0 0.0
        %1652 = vmatpush1.msra.mxu0 %v1618
        %1653 = vmatprep.subr.mxu0 0.0
        %1654 = vmatpush1.msra.mxu0 %v1619
        %1655 = vmatprep.subr.mxu0 0.0
        %1656 = vmatpush1.msra.mxu0 %v1620
        %1657 = vmatprep.subr.mxu0 0.0
        %1658 = vmatpush1.msra.mxu0 %v1621
        %1659 = vmatprep.subr.mxu0 0.0
        %1660 = vmatpush1.msra.mxu0 %v1622
        %1661 = vmatprep.subr.mxu0 0.0
        %1662 = vmatpush1.msra.mxu0 %v1623
        %1663 = vmatprep.subr.mxu0 0.0
        %1664 = vmatpush1.msra.mxu0 0.0
        %1665 = vmatprep.subr.mxu0 0.0
        %1666 = vmatpush1.msra.mxu0 0.0
        %1667 = vmatprep.subr.mxu0 0.0
        %1668 = vmatpush1.msra.mxu0 0.0
        %1669 = vmatprep.subr.mxu0 0.0
        %1670 = vmatpush1.msra.mxu0 0.0
        %1671 = vmatprep.subr.mxu0 0.0
        %1672 = vmatpush1.msra.mxu0 0.0
        %1673 = vmatprep.subr.mxu0 0.0
        %1674 = vmatpush1.msra.mxu0 0.0
        %1675 = vmatprep.subr.mxu0 0.0
        %1676 = vmatpush1.msra.mxu0 0.0
        %1677 = vmatprep.subr.mxu0 0.0
        %1678 = vmatpush1.msra.mxu0 0.0
        %1679 = vmatprep.subr.mxu0 0.0
        %1680 = vmatpush1.msra.mxu0 0.0
        %1681 = vmatprep.subr.mxu0 0.0
        %1682 = vmatpush1.msra.mxu0 0.0
        %1683 = vmatprep.subr.mxu0 0.0
        %1684 = vmatpush1.msra.mxu0 0.0
        %1685 = vmatprep.subr.mxu0 0.0
        %1686 = vmatpush1.msra.mxu0 0.0
        %1687 = vmatprep.subr.mxu0 0.0
        %1688 = vmatpush1.msra.mxu0 0.0
        %1689 = vmatprep.subr.mxu0 0.0
        %1690 = vmatpush1.msra.mxu0 0.0
        %1691 = vmatprep.subr.mxu0 0.0
        %1692 = vmatpush1.msra.mxu0 0.0
        %1693 = vmatprep.subr.mxu0 0.0
        %1694 = vmatpush1.msra.mxu0 0.0
        %1695 = vmatprep.mubr.f32.mxu0 0.0
        %1696 = vmatmul.mubr.f32.gmra.mrb[0].mxu0 %v1607
        %v1697 = vpop.f32.mrb[0].mxu0
        %v1698 = vadd.f32 %v1629, %v1697
        %v1699 = vpop.f32.mrb[0].mxu0
        %1700 = vdwg.mxu0
        %v1701 = vadd.f32 %v1493, %v1698
        %1702 = vst.msk [vmem:[%s404] sm:$0xff] %vm412, %v1701
        %s1703 = sand.u32 %s291, 1
        %s1704 = scalar_lea.sflag [#allocation3], %s1703
        %s1705 = sand.u32 %s291, 1
        %s1706 = smul.addr %s1705, 8
        %s1707 = scalar_lea.vmem [#allocation2], %s1706
        // Predicated region
        $region69: #{tpu_custom_call.1} parent=67 // pred_check
          %p1708 = pneg %p301
        $region70: #{tpu_custom_call.1} parent=67 // pred_check_branch
          %1710 = sbr.rel (%p1708) target = $region72
        $region71: #{tpu_custom_call.1} parent=67 // pred_region
          %s1712 = ssub.s32 128, 128
          %1713 = vsyncadd %s1704, %s1712
          %s1714 = smul.addr %s26, 128
          %s1715 = scalar_lea.hbm %s12, %s1714
          %s1717 = sshll.u32 %s1707, 4
          %s1718 = int_to_ptr.vmem [resolvable:$true] %s1717
          %1720 = dma.vmem_to_hbm [thread:$0]  %s1718, 128, %s1715, %s1704
        $region72: #{tpu_custom_call.1} parent=67 // pred_fallthru
          _
      $region68: #{tpu_custom_call.1} parent=5 // pred_fallthru
        _
      %p1721 = scmp.le.s32.totalorder 2, %s21
      // Predicated region
      $region73: #{tpu_custom_call.1} parent=5 // pred_check
        %p1722 = pneg %p1721
      $region74: #{tpu_custom_call.1} parent=5 // pred_check_branch
        %1724 = sbr.rel (%p1722) target = $region76
      $region75: #{tpu_custom_call.1} parent=5 // pred_region
        %s1725 = ssub.s32 %s21, 2
        // Predicated region
        $region77: #{tpu_custom_call.1} parent=75 // pred_check
          %p1726 = pneg %p307
        $region78: #{tpu_custom_call.1} parent=75 // pred_check_branch
          %1728 = sbr.rel (%p1726) target = $region80
        $region79: #{tpu_custom_call.1} parent=75 // pred_region
          %s1729 = sand.u32 %s292, 1
          %s1730 = scalar_lea.sflag [#allocation3], %s1729
          %s1731 = sand.u32 %s292, 1
          %s1732 = smul.addr %s1731, 8
          %s1733 = scalar_lea.vmem [#allocation2], %s1732
          %1734 = dma.done %s1730, 128
        $region80: #{tpu_custom_call.1} parent=75 // pred_fallthru
          _
      $region76: #{tpu_custom_call.1} parent=5 // pred_fallthru
        _
    $region6: #{tpu_custom_call.1} parent=1 // loop_footer
      %s25 = sadd.s32 1, %s21
    $region7: #{tpu_custom_call.1} parent=1 // loop_footer_branch
      %20 = sbr.rel target = $region3
    $region8: #{tpu_custom_call.1} parent=1 // loop_exit
      _
    %1735 = vsyncpa [#allocation3], 1
    %s1736 = scalar_lea.sflag [#allocation3], 1
    %1737 = vsyncpa %s1736, 1

</llo_original>
